<compile_context>
chip_gen: v7x
topology: tpu7x:2x2x1
jax: 0.10.0
libtpu: 0.0.40
codegen_flags: <defaults>
</compile_context>

<pallas_src>
import jax
import jax.numpy as jnp
from jax.experimental import pallas as pl
from jax.experimental.pallas import tpu as pltpu


def _round_up(n: int, m: int) -> int:
    return ((n + m - 1) // m) * m


def _head_kernel(x_ref, w1_ref, b1_ref, w2_ref, b2_ref, o_ref):
    # x: [BT, 1024] bf16 (or f32, cast here); w1: [1024, 384] bf16
    # b1: [1, 384] f32; w2: [384, 128] bf16; b2: [1, 128] f32; o: [BT, 128]
    x = x_ref[...].astype(jnp.bfloat16)               # no-op for bf16 producers
    # dropout1 -> identity (eval mode)
    h = jnp.dot(x, w1_ref[...], preferred_element_type=jnp.float32)
    h = jnp.maximum(h + b1_ref[...], 0.0)             # F.relu(fc1(x))
    # dropout2 -> identity (eval mode)
    y = jnp.dot(h.astype(jnp.bfloat16), w2_ref[...],
                preferred_element_type=jnp.float32)
    o_ref[...] = (y + b2_ref[...]).astype(o_ref.dtype)


def prepare_fvnet_head_params(w1, b1, w2, b2):
    """One-time pad + bf16 cast of the head weights (hoisted out of the
    per-call path).

    w1: [1000, 320], b1: [320], w2: [320, 20], b2: [20] (PyTorch Linear
    weights already transposed so the kernel computes y = x @ W + b).
    Returns (w1_p [1024,384] bf16, b1_p [1,384] f32,
             w2_p [384,128] bf16, b2_p [1,128] f32).
    """
    F_in, H = w1.shape
    C = w2.shape[1]
    F_pad = _round_up(F_in, 128)     # 1000 -> 1024: lane-dense K for the MXU
    H_pad = _round_up(H, 128)        # 320  -> 384 : keep at 384 (v5e MXU-bound)
    C_pad = _round_up(C, 128)        # 20   -> 128 : unmasked lane-dense stores

    w1_p = jnp.pad(w1, ((0, F_pad - F_in), (0, H_pad - H))).astype(jnp.bfloat16)
    b1_p = jnp.pad(b1, (0, H_pad - H)).reshape(1, H_pad).astype(jnp.float32)
    w2_p = jnp.pad(w2, ((0, H_pad - H), (0, C_pad - C))).astype(jnp.bfloat16)
    b2_p = jnp.pad(b2, (0, C_pad - C)).reshape(1, C_pad).astype(jnp.float32)
    return w1_p, b1_p, w2_p, b2_p


def fvnet_head(x_feats, params, *, block_batch=512, out_dtype=jnp.float32):
    """x_feats: [B, 1000] (bf16 or f32 backbone features) -> [B, nclasses].

    `params` is the tuple returned by prepare_fvnet_head_params (reused
    across calls)."""
    w1_p, b1_p, w2_p, b2_p = params
    B, F_in = x_feats.shape
    F_pad, H_pad = w1_p.shape
    C_pad = w2_p.shape[1]

    # Batch tile: big (default 512) to amortize per-step overhead, rounded to
    # 16 rows (bf16 sublane packing), and capped at ~ceil(B/2) so mid-size
    # batches still produce >= 2 grid steps for v7x's two TensorCores.
    B_round = _round_up(B, 16)
    two_step_cap = _round_up(pl.cdiv(B_round, 2), 16)
    BT = max(16, min(block_batch, two_step_cap))
    B_pad = _round_up(B, BT)

    # Single pad pass on x only when needed; fuse the bf16 cast into it when
    # the producer handed us f32.  If x already has the padded shape, feed it
    # straight in (the kernel casts in-body -> no extra HBM roundtrip).
    if (B_pad != B) or (F_pad != F_in):
        x_p = jnp.pad(x_feats, ((0, B_pad - B), (0, F_pad - F_in)))
        if x_p.dtype != jnp.bfloat16:
            x_p = x_p.astype(jnp.bfloat16)
    else:
        x_p = x_feats

    grid = (pl.cdiv(B_pad, BT),)

    out = pl.pallas_call(
        _head_kernel,
        out_shape=jax.ShapeDtypeStruct((B_pad, C_pad), out_dtype),
        grid=grid,
        in_specs=[
            pl.BlockSpec((BT, F_pad), lambda i: (i, 0)),     # x: tiled over batch
            pl.BlockSpec((F_pad, H_pad), lambda i: (0, 0)),  # w1: resident
            pl.BlockSpec((1, H_pad), lambda i: (0, 0)),      # b1: resident
            pl.BlockSpec((H_pad, C_pad), lambda i: (0, 0)),  # w2: resident
            pl.BlockSpec((1, C_pad), lambda i: (0, 0)),      # b2: resident
        ],
        out_specs=pl.BlockSpec((BT, C_pad), lambda i: (i, 0)),
        compiler_params=pltpu.CompilerParams(
            dimension_semantics=("parallel",),
        ),
    )(x_p, w1_p, b1_p, w2_p, b2_p)

    nclasses = b2_p.shape[1] if False else None  # (placeholder, sliced below)
    return out[:B, :]


def reference_head(x_feats, w1, b1, w2, b2):
    # Reference applies the same bf16 quantization of x / w1 / w2 / h that the
    # kernel uses, with f32 accumulation, so tolerances stay tight.
    xb = x_feats.astype(jnp.bfloat16).astype(jnp.float32)
    w1b = w1.astype(jnp.bfloat16).astype(jnp.float32)
    w2b = w2.astype(jnp.bfloat16).astype(jnp.float32)
    h = jnp.maximum(xb @ w1b + b1, 0.0)
    hb = h.astype(jnp.bfloat16).astype(jnp.float32)
    return hb @ w2b + b2


if __name__ == "__main__":
    nclasses = 20
    in_feats = 1000   # vit_l_16 classifier output dim
    hidden = 320
    batch = 2

    key = jax.random.PRNGKey(0)
    k_x, k_w1, k_b1, k_w2, k_b2 = jax.random.split(key, 5)

    # Deterministic synthetic "ViT features" standing in for vitnet(x) output.
    # The backbone emits bf16 features directly (saves an HBM cast pass).
    x_feats = jax.random.normal(k_x, (batch, in_feats),
                                dtype=jnp.float32).astype(jnp.bfloat16)

    # Deterministic parameter init (shapes match nn.Linear(1000,320), nn.Linear(320,20)).
    w1 = jax.random.normal(k_w1, (in_feats, hidden), dtype=jnp.float32) * 0.02
    b1 = jax.random.normal(k_b1, (hidden,), dtype=jnp.float32) * 0.02
    w2 = jax.random.normal(k_w2, (hidden, nclasses), dtype=jnp.float32) * 0.02
    b2 = jax.random.normal(k_b2, (nclasses,), dtype=jnp.float32) * 0.02

    # One-time weight prep, reused across all forwards.
    params = jax.tree_util.tree_map(
        jax.block_until_ready, prepare_fvnet_head_params(w1, b1, w2, b2))

    out_padded = fvnet_head(x_feats, params)
    out_padded = jax.block_until_ready(out_padded)
    out = out_padded[:, :nclasses]

    ref = reference_head(x_feats, w1, b1, w2, b2)
    assert out.shape == (batch, nclasses)
    assert jnp.allclose(out, ref, atol=2e-3, rtol=2e-3)

    print("KERNEL_OK")
</pallas_src>

<mosaic_0001>
module attributes {stable_mosaic.version = 11 : i64} {
  func.func @_head_kernel(%arg0: i32, %arg1: memref<16x1024xbf16, #tpu.memory_space<vmem>>, %arg2: memref<1024x384xbf16, #tpu.memory_space<vmem>>, %arg3: memref<1x384xf32, #tpu.memory_space<vmem>>, %arg4: memref<384x128xbf16, #tpu.memory_space<vmem>>, %arg5: memref<1x128xf32, #tpu.memory_space<vmem>>, %arg6: memref<16x128xf32, #tpu.memory_space<vmem>>) attributes {dimension_semantics = [#tpu.dimension_semantics<parallel>], iteration_bounds = array<i64: 1>, scalar_prefetch = 0 : i64, scratch_operands = 0 : i64, tpu.core_type = #tpu.core_type<tc>, window_params = [{transform_indices = @transform_0, window_bounds = array<i64: 16, 1024>}, {pipeline_mode = #tpu.pipeline_mode<synchronous>, transform_indices = @transform_1, window_bounds = array<i64: 1024, 384>}, {pipeline_mode = #tpu.pipeline_mode<synchronous>, transform_indices = @transform_2, window_bounds = array<i64: 1, 384>}, {pipeline_mode = #tpu.pipeline_mode<synchronous>, transform_indices = @transform_3, window_bounds = array<i64: 384, 128>}, {pipeline_mode = #tpu.pipeline_mode<synchronous>, transform_indices = @transform_4, window_bounds = array<i64: 1, 128>}, {transform_indices = @transform_5, window_bounds = array<i64: 16, 128>}]} {
    %c0 = arith.constant 0 : index
    %c0_0 = arith.constant 0 : index
    %0 = vector.load %arg1[%c0, %c0_0] : memref<16x1024xbf16, #tpu.memory_space<vmem>>, vector<16x1024xbf16>
    %c0_1 = arith.constant 0 : index
    %c0_2 = arith.constant 0 : index
    %1 = vector.load %arg2[%c0_1, %c0_2] : memref<1024x384xbf16, #tpu.memory_space<vmem>>, vector<1024x384xbf16>
    %cst = arith.constant dense<0.000000e+00> : vector<16x384xf32>
    %2 = tpu.matmul %0, %1, %cst {dimension_numbers = #tpu.dot_dimension_numbers<[1], [0], [0], [1], [0, 0, 1, 1], [], []>} : vector<16x1024xbf16>, vector<1024x384xbf16>, vector<16x384xf32> -> vector<16x384xf32>
    %c0_3 = arith.constant 0 : index
    %c0_4 = arith.constant 0 : index
    %3 = vector.load %arg3[%c0_3, %c0_4] : memref<1x384xf32, #tpu.memory_space<vmem>>, vector<1x384xf32>
    %4 = vector.broadcast %3 : vector<1x384xf32> to vector<16x384xf32>
    %5 = arith.addf %2, %4 : vector<16x384xf32>
    %cst_5 = arith.constant 0.000000e+00 : f32
    %6 = vector.broadcast %cst_5 : f32 to vector<16x384xf32>
    %7 = arith.maximumf %5, %6 : vector<16x384xf32>
    %8 = arith.truncf %7 : vector<16x384xf32> to vector<16x384xbf16>
    %c0_6 = arith.constant 0 : index
    %c0_7 = arith.constant 0 : index
    %9 = vector.load %arg4[%c0_6, %c0_7] : memref<384x128xbf16, #tpu.memory_space<vmem>>, vector<384x128xbf16>
    %cst_8 = arith.constant dense<0.000000e+00> : vector<16x128xf32>
    %10 = tpu.matmul %8, %9, %cst_8 {dimension_numbers = #tpu.dot_dimension_numbers<[1], [0], [0], [1], [0, 0, 1, 1], [], []>} : vector<16x384xbf16>, vector<384x128xbf16>, vector<16x128xf32> -> vector<16x128xf32>
    %c0_9 = arith.constant 0 : index
    %c0_10 = arith.constant 0 : index
    %11 = vector.load %arg5[%c0_9, %c0_10] : memref<1x128xf32, #tpu.memory_space<vmem>>, vector<1x128xf32>
    %12 = vector.broadcast %11 : vector<1x128xf32> to vector<16x128xf32>
    %13 = arith.addf %10, %12 : vector<16x128xf32>
    %c0_11 = arith.constant 0 : index
    %c0_12 = arith.constant 0 : index
    %14 = vector.load %arg6[%c0_11, %c0_12] : memref<16x128xf32, #tpu.memory_space<vmem>>, vector<16x128xf32>
    tpu.vector_store %arg6[%c0_11, %c0_12], %13 {strides = array<i32>} : memref<16x128xf32, #tpu.memory_space<vmem>>, vector<16x128xf32>,
    return
  }
  func.func @transform_0(%arg0: i32) -> (i32, i32) {
    %c0_i32 = arith.constant 0 : i32
    %c0_i32_0 = arith.constant 0 : i32
    return %arg0, %c0_i32 : i32, i32
  }
  func.func @transform_1(%arg0: i32) -> (i32, i32) {
    %c0_i32 = arith.constant 0 : i32
    %c0_i32_0 = arith.constant 0 : i32
    %c0_i32_1 = arith.constant 0 : i32
    return %c0_i32, %c0_i32_0 : i32, i32
  }
  func.func @transform_2(%arg0: i32) -> (i32, i32) {
    %c0_i32 = arith.constant 0 : i32
    %c0_i32_0 = arith.constant 0 : i32
    %c0_i32_1 = arith.constant 0 : i32
    return %c0_i32, %c0_i32_0 : i32, i32
  }
  func.func @transform_3(%arg0: i32) -> (i32, i32) {
    %c0_i32 = arith.constant 0 : i32
    %c0_i32_0 = arith.constant 0 : i32
    %c0_i32_1 = arith.constant 0 : i32
    return %c0_i32, %c0_i32_0 : i32, i32
  }
  func.func @transform_4(%arg0: i32) -> (i32, i32) {
    %c0_i32 = arith.constant 0 : i32
    %c0_i32_0 = arith.constant 0 : i32
    %c0_i32_1 = arith.constant 0 : i32
    return %c0_i32, %c0_i32_0 : i32, i32
  }
  func.func @transform_5(%arg0: i32) -> (i32, i32) {
    %c0_i32 = arith.constant 0 : i32
    %c0_i32_0 = arith.constant 0 : i32
    return %arg0, %c0_i32 : i32, i32
  }
}

</mosaic_0001>

<llo_original>
// kernel: tpu_custom_call.1
$region0: #{tpu_custom_call.1}
  #allocation0 [shape = 'u32[]', space=smem, size = 0x4, offset = 0x4, fixed_abs, tag = 'smem constant byte address 0x4 - core index']
  #allocation1 [shape = 'u32[144,128]{1,0:T(1,128)}', space=vmem, size = 0x12000, scoped, tag = 'internal scratch']
  %s0 = inlined_call_operand.hbm [shape: bf16[16,1024], index: 0, kind: input, shape index: {}]
  %s1 = inlined_call_operand.hbm [shape: bf16[1024,384], index: 1, kind: input, shape index: {}]
  %s2 = inlined_call_operand.vmem [shape: f32[1,384], index: 2, kind: input, shape index: {}]
  %s3 = inlined_call_operand.hbm [shape: bf16[384,128], index: 3, kind: input, shape index: {}]
  %s4 = inlined_call_operand.vmem [shape: f32[1,128], index: 4, kind: input, shape index: {}]
  %s5 = inlined_call_operand.hbm [shape: f32[16,128], index: 5, kind: output, shape index: {}]
  %s6 = sld [smem:[#allocation0]]
  $region42: #{tpu_custom_call.1} parent=0
    _
  %s8 = ssub.s32 1, %s6
  %s9 = scalar_select 0, %s8, %s6
  $region1: #{tpu_custom_call.1} parent=0
    #allocation2 [shape = 'u8[32768]{0}', space=vmem, size = 0x8000, scoped, tag = 'input window, operand 0, single buffered']
    #allocation3 [shape = 's32[1]{0}', space=sflag, size = 0x4, scoped, tag = 'scoped memory for tpu_custom_call.1']
    #allocation4 [shape = 's32[1]{0}', space=sflag, size = 0x4, scoped, tag = 'scoped memory for tpu_custom_call.1']
    #allocation5 [shape = 'u8[786432]{0}', space=vmem, size = 0xc0000, scoped, tag = 'input window, operand 1, single buffered']
    #allocation6 [shape = 's32[1]{0}', space=sflag, size = 0x4, scoped, tag = 'scoped memory for tpu_custom_call.1']
    #allocation7 [shape = 'u8[98304]{0}', space=vmem, size = 0x18000, scoped, tag = 'input window, operand 3, single buffered']
    #allocation8 [shape = 'u8[8192]{0}', space=vmem, size = 0x2000, scoped, tag = 'output window, operand 0, single buffered']
    %10 = vsyncpa [#allocation3], 0
    %11 = vsyncpa [#allocation6], 0
    %12 = vsyncpa [#allocation4], 0
    // Predicated region
    $region2: #{tpu_custom_call.1} parent=1 // pred_check
      _
    $region3: #{tpu_custom_call.1} parent=1 // pred_check_branch
      %14 = sbr.rel (0) target = $region5
    $region4: #{tpu_custom_call.1} parent=1 // pred_region
      %s16 = ssub.s32 1024, 1024
      %17 = vsyncadd [#allocation3], %s16
      %s18 = sshll.u32 [#allocation2], 4
      %s19 = int_to_ptr.vmem [resolvable:$true] %s18
      %24 = dma.hbm_to_vmem [thread:$0]  %s0, 1024, %s19, [#allocation3], 512, 512, 32
    $region5: #{tpu_custom_call.1} parent=1 // pred_fallthru
      _
    // Predicated region
    $region6: #{tpu_custom_call.1} parent=1 // pred_check
      _
    $region7: #{tpu_custom_call.1} parent=1 // pred_check_branch
      %26 = sbr.rel (0) target = $region9
    $region8: #{tpu_custom_call.1} parent=1 // pred_region
      %s28 = ssub.s32 24576, 24576
      %29 = vsyncadd [#allocation6], %s28
      %s30 = sshll.u32 [#allocation5], 4
      %s31 = int_to_ptr.vmem [resolvable:$true] %s30
      %36 = dma.hbm_to_vmem [thread:$0]  %s1, 24576, %s31, [#allocation6], 192, 192, 12
    $region9: #{tpu_custom_call.1} parent=1 // pred_fallthru
      _
    // Predicated region
    $region10: #{tpu_custom_call.1} parent=1 // pred_check
      _
    $region11: #{tpu_custom_call.1} parent=1 // pred_check_branch
      %38 = sbr.rel (0) target = $region13
    $region12: #{tpu_custom_call.1} parent=1 // pred_region
      _
    $region13: #{tpu_custom_call.1} parent=1 // pred_fallthru
      _
    // Predicated region
    $region14: #{tpu_custom_call.1} parent=1 // pred_check
      _
    $region15: #{tpu_custom_call.1} parent=1 // pred_check_branch
      %40 = sbr.rel (0) target = $region17
    $region16: #{tpu_custom_call.1} parent=1 // pred_region
      %s42 = ssub.s32 3072, 3072
      %43 = vsyncadd [#allocation6], %s42
      %s44 = sshll.u32 [#allocation7], 4
      %s45 = int_to_ptr.vmem [resolvable:$true] %s44
      %50 = dma.hbm_to_vmem [thread:$0]  %s3, 3072, %s45, [#allocation6], 64, 64, 4
    $region17: #{tpu_custom_call.1} parent=1 // pred_fallthru
      _
    // Predicated region
    $region18: #{tpu_custom_call.1} parent=1 // pred_check
      _
    $region19: #{tpu_custom_call.1} parent=1 // pred_check_branch
      %52 = sbr.rel (0) target = $region21
    $region20: #{tpu_custom_call.1} parent=1 // pred_region
      _
    $region21: #{tpu_custom_call.1} parent=1 // pred_fallthru
      _
    // Predicated region
    $region22: #{tpu_custom_call.1} parent=1 // pred_check
      _
    $region23: #{tpu_custom_call.1} parent=1 // pred_check_branch
      %54 = sbr.rel (0) target = $region25
    $region24: #{tpu_custom_call.1} parent=1 // pred_region
      %55 = dma.done [#allocation3], 1024
    $region25: #{tpu_custom_call.1} parent=1 // pred_fallthru
      _
    // Predicated region
    $region26: #{tpu_custom_call.1} parent=1 // pred_check
      _
    $region27: #{tpu_custom_call.1} parent=1 // pred_check_branch
      %57 = sbr.rel (0) target = $region29
    $region28: #{tpu_custom_call.1} parent=1 // pred_region
      %58 = dma.done [#allocation6], 24576
    $region29: #{tpu_custom_call.1} parent=1 // pred_fallthru
      _
    // Predicated region
    $region30: #{tpu_custom_call.1} parent=1 // pred_check
      _
    $region31: #{tpu_custom_call.1} parent=1 // pred_check_branch
      %60 = sbr.rel (0) target = $region33
    $region32: #{tpu_custom_call.1} parent=1 // pred_region
      %61 = dma.done [#allocation6], 3072
    $region33: #{tpu_custom_call.1} parent=1 // pred_fallthru
      _
    %v63 = vld [vmem:[#allocation2] sm:$0xff]
    %v64 = vld [vmem:[#allocation2 + $0x8] sm:$0xff]
    %v65 = vld [vmem:[#allocation2 + $0x10] sm:$0xff]
    %v66 = vld [vmem:[#allocation2 + $0x18] sm:$0xff]
    %v67 = vld [vmem:[#allocation2 + $0x20] sm:$0xff]
    %v68 = vld [vmem:[#allocation2 + $0x28] sm:$0xff]
    %v69 = vld [vmem:[#allocation2 + $0x30] sm:$0xff]
    %v70 = vld [vmem:[#allocation2 + $0x38] sm:$0xff]
    %v71 = vld [vmem:[#allocation5] sm:$0xff]
    %v72 = vld [vmem:[#allocation5 + $0x8] sm:$0xf]
    %v73 = vld [vmem:[#allocation5 + $0xc] sm:$0xff]
    %v74 = vld [vmem:[#allocation5 + $0x14] sm:$0xf]
    %v75 = vld [vmem:[#allocation5 + $0x18] sm:$0xff]
    %v76 = vld [vmem:[#allocation5 + $0x20] sm:$0xf]
    %v77 = vld [vmem:[#allocation5 + $0x24] sm:$0xff]
    %v78 = vld [vmem:[#allocation5 + $0x2c] sm:$0xf]
    %v79 = vld [vmem:[#allocation5 + $0x30] sm:$0xff]
    %v80 = vld [vmem:[#allocation5 + $0x38] sm:$0xf]
    %v81 = vld [vmem:[#allocation5 + $0x3c] sm:$0xff]
    %v82 = vld [vmem:[#allocation5 + $0x44] sm:$0xf]
    %v83 = vld [vmem:[#allocation5 + $0x48] sm:$0xff]
    %v84 = vld [vmem:[#allocation5 + $0x50] sm:$0xf]
    %v85 = vld [vmem:[#allocation5 + $0x54] sm:$0xff]
    %v86 = vld [vmem:[#allocation5 + $0x5c] sm:$0xf]
    %v87 = vld [vmem:[#allocation5 + $0x60] sm:$0xff]
    %v88 = vld [vmem:[#allocation5 + $0x68] sm:$0xf]
    %v89 = vld [vmem:[#allocation5 + $0x6c] sm:$0xff]
    %v90 = vld [vmem:[#allocation5 + $0x74] sm:$0xf]
    %v91 = vld [vmem:[#allocation5 + $0x78] sm:$0xff]
    %v92 = vld [vmem:[#allocation5 + $0x80] sm:$0xf]
    %v93 = vld [vmem:[#allocation5 + $0x84] sm:$0xff]
    %v94 = vld [vmem:[#allocation5 + $0x8c] sm:$0xf]
    %v95 = vld [vmem:[#allocation5 + $0x90] sm:$0xff]
    %v96 = vld [vmem:[#allocation5 + $0x98] sm:$0xf]
    %v97 = vld [vmem:[#allocation5 + $0x9c] sm:$0xff]
    %v98 = vld [vmem:[#allocation5 + $0xa4] sm:$0xf]
    %v99 = vld [vmem:[#allocation5 + $0xa8] sm:$0xff]
    %v100 = vld [vmem:[#allocation5 + $0xb0] sm:$0xf]
    %v101 = vld [vmem:[#allocation5 + $0xb4] sm:$0xff]
    %v102 = vld [vmem:[#allocation5 + $0xbc] sm:$0xf]
    %v103 = vld [vmem:[#allocation5 + $0xc0] sm:$0xff]
    %v104 = vld [vmem:[#allocation5 + $0xc8] sm:$0xf]
    %v105 = vld [vmem:[#allocation5 + $0xcc] sm:$0xff]
    %v106 = vld [vmem:[#allocation5 + $0xd4] sm:$0xf]
    %v107 = vld [vmem:[#allocation5 + $0xd8] sm:$0xff]
    %v108 = vld [vmem:[#allocation5 + $0xe0] sm:$0xf]
    %v109 = vld [vmem:[#allocation5 + $0xe4] sm:$0xff]
    %v110 = vld [vmem:[#allocation5 + $0xec] sm:$0xf]
    %v111 = vld [vmem:[#allocation5 + $0xf0] sm:$0xff]
    %v112 = vld [vmem:[#allocation5 + $0xf8] sm:$0xf]
    %v113 = vld [vmem:[#allocation5 + $0xfc] sm:$0xff]
    %v114 = vld [vmem:[#allocation5 + $0x104] sm:$0xf]
    %v115 = vld [vmem:[#allocation5 + $0x108] sm:$0xff]
    %v116 = vld [vmem:[#allocation5 + $0x110] sm:$0xf]
    %v117 = vld [vmem:[#allocation5 + $0x114] sm:$0xff]
    %v118 = vld [vmem:[#allocation5 + $0x11c] sm:$0xf]
    %v119 = vld [vmem:[#allocation5 + $0x120] sm:$0xff]
    %v120 = vld [vmem:[#allocation5 + $0x128] sm:$0xf]
    %v121 = vld [vmem:[#allocation5 + $0x12c] sm:$0xff]
    %v122 = vld [vmem:[#allocation5 + $0x134] sm:$0xf]
    %v123 = vld [vmem:[#allocation5 + $0x138] sm:$0xff]
    %v124 = vld [vmem:[#allocation5 + $0x140] sm:$0xf]
    %v125 = vld [vmem:[#allocation5 + $0x144] sm:$0xff]
    %v126 = vld [vmem:[#allocation5 + $0x14c] sm:$0xf]
    %v127 = vld [vmem:[#allocation5 + $0x150] sm:$0xff]
    %v128 = vld [vmem:[#allocation5 + $0x158] sm:$0xf]
    %v129 = vld [vmem:[#allocation5 + $0x15c] sm:$0xff]
    %v130 = vld [vmem:[#allocation5 + $0x164] sm:$0xf]
    %v131 = vld [vmem:[#allocation5 + $0x168] sm:$0xff]
    %v132 = vld [vmem:[#allocation5 + $0x170] sm:$0xf]
    %v133 = vld [vmem:[#allocation5 + $0x174] sm:$0xff]
    %v134 = vld [vmem:[#allocation5 + $0x17c] sm:$0xf]
    %v135 = vld [vmem:[#allocation5 + $0x180] sm:$0xff]
    %v136 = vld [vmem:[#allocation5 + $0x188] sm:$0xf]
    %v137 = vld [vmem:[#allocation5 + $0x18c] sm:$0xff]
    %v138 = vld [vmem:[#allocation5 + $0x194] sm:$0xf]
    %v139 = vld [vmem:[#allocation5 + $0x198] sm:$0xff]
    %v140 = vld [vmem:[#allocation5 + $0x1a0] sm:$0xf]
    %v141 = vld [vmem:[#allocation5 + $0x1a4] sm:$0xff]
    %v142 = vld [vmem:[#allocation5 + $0x1ac] sm:$0xf]
    %v143 = vld [vmem:[#allocation5 + $0x1b0] sm:$0xff]
    %v144 = vld [vmem:[#allocation5 + $0x1b8] sm:$0xf]
    %v145 = vld [vmem:[#allocation5 + $0x1bc] sm:$0xff]
    %v146 = vld [vmem:[#allocation5 + $0x1c4] sm:$0xf]
    %v147 = vld [vmem:[#allocation5 + $0x1c8] sm:$0xff]
    %v148 = vld [vmem:[#allocation5 + $0x1d0] sm:$0xf]
    %v149 = vld [vmem:[#allocation5 + $0x1d4] sm:$0xff]
    %v150 = vld [vmem:[#allocation5 + $0x1dc] sm:$0xf]
    %v151 = vld [vmem:[#allocation5 + $0x1e0] sm:$0xff]
    %v152 = vld [vmem:[#allocation5 + $0x1e8] sm:$0xf]
    %v153 = vld [vmem:[#allocation5 + $0x1ec] sm:$0xff]
    %v154 = vld [vmem:[#allocation5 + $0x1f4] sm:$0xf]
    %v155 = vld [vmem:[#allocation5 + $0x1f8] sm:$0xff]
    %v156 = vld [vmem:[#allocation5 + $0x200] sm:$0xf]
    %v157 = vld [vmem:[#allocation5 + $0x204] sm:$0xff]
    %v158 = vld [vmem:[#allocation5 + $0x20c] sm:$0xf]
    %v159 = vld [vmem:[#allocation5 + $0x210] sm:$0xff]
    %v160 = vld [vmem:[#allocation5 + $0x218] sm:$0xf]
    %v161 = vld [vmem:[#allocation5 + $0x21c] sm:$0xff]
    %v162 = vld [vmem:[#allocation5 + $0x224] sm:$0xf]
    %v163 = vld [vmem:[#allocation5 + $0x228] sm:$0xff]
    %v164 = vld [vmem:[#allocation5 + $0x230] sm:$0xf]
    %v165 = vld [vmem:[#allocation5 + $0x234] sm:$0xff]
    %v166 = vld [vmem:[#allocation5 + $0x23c] sm:$0xf]
    %v167 = vld [vmem:[#allocation5 + $0x240] sm:$0xff]
    %v168 = vld [vmem:[#allocation5 + $0x248] sm:$0xf]
    %v169 = vld [vmem:[#allocation5 + $0x24c] sm:$0xff]
    %v170 = vld [vmem:[#allocation5 + $0x254] sm:$0xf]
    %v171 = vld [vmem:[#allocation5 + $0x258] sm:$0xff]
    %v172 = vld [vmem:[#allocation5 + $0x260] sm:$0xf]
    %v173 = vld [vmem:[#allocation5 + $0x264] sm:$0xff]
    %v174 = vld [vmem:[#allocation5 + $0x26c] sm:$0xf]
    %v175 = vld [vmem:[#allocation5 + $0x270] sm:$0xff]
    %v176 = vld [vmem:[#allocation5 + $0x278] sm:$0xf]
    %v177 = vld [vmem:[#allocation5 + $0x27c] sm:$0xff]
    %v178 = vld [vmem:[#allocation5 + $0x284] sm:$0xf]
    %v179 = vld [vmem:[#allocation5 + $0x288] sm:$0xff]
    %v180 = vld [vmem:[#allocation5 + $0x290] sm:$0xf]
    %v181 = vld [vmem:[#allocation5 + $0x294] sm:$0xff]
    %v182 = vld [vmem:[#allocation5 + $0x29c] sm:$0xf]
    %v183 = vld [vmem:[#allocation5 + $0x2a0] sm:$0xff]
    %v184 = vld [vmem:[#allocation5 + $0x2a8] sm:$0xf]
    %v185 = vld [vmem:[#allocation5 + $0x2ac] sm:$0xff]
    %v186 = vld [vmem:[#allocation5 + $0x2b4] sm:$0xf]
    %v187 = vld [vmem:[#allocation5 + $0x2b8] sm:$0xff]
    %v188 = vld [vmem:[#allocation5 + $0x2c0] sm:$0xf]
    %v189 = vld [vmem:[#allocation5 + $0x2c4] sm:$0xff]
    %v190 = vld [vmem:[#allocation5 + $0x2cc] sm:$0xf]
    %v191 = vld [vmem:[#allocation5 + $0x2d0] sm:$0xff]
    %v192 = vld [vmem:[#allocation5 + $0x2d8] sm:$0xf]
    %v193 = vld [vmem:[#allocation5 + $0x2dc] sm:$0xff]
    %v194 = vld [vmem:[#allocation5 + $0x2e4] sm:$0xf]
    %v195 = vld [vmem:[#allocation5 + $0x2e8] sm:$0xff]
    %v196 = vld [vmem:[#allocation5 + $0x2f0] sm:$0xf]
    %v197 = vld [vmem:[#allocation5 + $0x2f4] sm:$0xff]
    %v198 = vld [vmem:[#allocation5 + $0x2fc] sm:$0xf]
    %v199 = vld [vmem:[#allocation5 + $0x300] sm:$0xff]
    %v200 = vld [vmem:[#allocation5 + $0x308] sm:$0xf]
    %v201 = vld [vmem:[#allocation5 + $0x30c] sm:$0xff]
    %v202 = vld [vmem:[#allocation5 + $0x314] sm:$0xf]
    %v203 = vld [vmem:[#allocation5 + $0x318] sm:$0xff]
    %v204 = vld [vmem:[#allocation5 + $0x320] sm:$0xf]
    %v205 = vld [vmem:[#allocation5 + $0x324] sm:$0xff]
    %v206 = vld [vmem:[#allocation5 + $0x32c] sm:$0xf]
    %v207 = vld [vmem:[#allocation5 + $0x330] sm:$0xff]
    %v208 = vld [vmem:[#allocation5 + $0x338] sm:$0xf]
    %v209 = vld [vmem:[#allocation5 + $0x33c] sm:$0xff]
    %v210 = vld [vmem:[#allocation5 + $0x344] sm:$0xf]
    %v211 = vld [vmem:[#allocation5 + $0x348] sm:$0xff]
    %v212 = vld [vmem:[#allocation5 + $0x350] sm:$0xf]
    %v213 = vld [vmem:[#allocation5 + $0x354] sm:$0xff]
    %v214 = vld [vmem:[#allocation5 + $0x35c] sm:$0xf]
    %v215 = vld [vmem:[#allocation5 + $0x360] sm:$0xff]
    %v216 = vld [vmem:[#allocation5 + $0x368] sm:$0xf]
    %v217 = vld [vmem:[#allocation5 + $0x36c] sm:$0xff]
    %v218 = vld [vmem:[#allocation5 + $0x374] sm:$0xf]
    %v219 = vld [vmem:[#allocation5 + $0x378] sm:$0xff]
    %v220 = vld [vmem:[#allocation5 + $0x380] sm:$0xf]
    %v221 = vld [vmem:[#allocation5 + $0x384] sm:$0xff]
    %v222 = vld [vmem:[#allocation5 + $0x38c] sm:$0xf]
    %v223 = vld [vmem:[#allocation5 + $0x390] sm:$0xff]
    %v224 = vld [vmem:[#allocation5 + $0x398] sm:$0xf]
    %v225 = vld [vmem:[#allocation5 + $0x39c] sm:$0xff]
    %v226 = vld [vmem:[#allocation5 + $0x3a4] sm:$0xf]
    %v227 = vld [vmem:[#allocation5 + $0x3a8] sm:$0xff]
    %v228 = vld [vmem:[#allocation5 + $0x3b0] sm:$0xf]
    %v229 = vld [vmem:[#allocation5 + $0x3b4] sm:$0xff]
    %v230 = vld [vmem:[#allocation5 + $0x3bc] sm:$0xf]
    %v231 = vld [vmem:[#allocation5 + $0x3c0] sm:$0xff]
    %v232 = vld [vmem:[#allocation5 + $0x3c8] sm:$0xf]
    %v233 = vld [vmem:[#allocation5 + $0x3cc] sm:$0xff]
    %v234 = vld [vmem:[#allocation5 + $0x3d4] sm:$0xf]
    %v235 = vld [vmem:[#allocation5 + $0x3d8] sm:$0xff]
    %v236 = vld [vmem:[#allocation5 + $0x3e0] sm:$0xf]
    %v237 = vld [vmem:[#allocation5 + $0x3e4] sm:$0xff]
    %v238 = vld [vmem:[#allocation5 + $0x3ec] sm:$0xf]
    %v239 = vld [vmem:[#allocation5 + $0x3f0] sm:$0xff]
    %v240 = vld [vmem:[#allocation5 + $0x3f8] sm:$0xf]
    %v241 = vld [vmem:[#allocation5 + $0x3fc] sm:$0xff]
    %v242 = vld [vmem:[#allocation5 + $0x404] sm:$0xf]
    %v243 = vld [vmem:[#allocation5 + $0x408] sm:$0xff]
    %v244 = vld [vmem:[#allocation5 + $0x410] sm:$0xf]
    %v245 = vld [vmem:[#allocation5 + $0x414] sm:$0xff]
    %v246 = vld [vmem:[#allocation5 + $0x41c] sm:$0xf]
    %v247 = vld [vmem:[#allocation5 + $0x420] sm:$0xff]
    %v248 = vld [vmem:[#allocation5 + $0x428] sm:$0xf]
    %v249 = vld [vmem:[#allocation5 + $0x42c] sm:$0xff]
    %v250 = vld [vmem:[#allocation5 + $0x434] sm:$0xf]
    %v251 = vld [vmem:[#allocation5 + $0x438] sm:$0xff]
    %v252 = vld [vmem:[#allocation5 + $0x440] sm:$0xf]
    %v253 = vld [vmem:[#allocation5 + $0x444] sm:$0xff]
    %v254 = vld [vmem:[#allocation5 + $0x44c] sm:$0xf]
    %v255 = vld [vmem:[#allocation5 + $0x450] sm:$0xff]
    %v256 = vld [vmem:[#allocation5 + $0x458] sm:$0xf]
    %v257 = vld [vmem:[#allocation5 + $0x45c] sm:$0xff]
    %v258 = vld [vmem:[#allocation5 + $0x464] sm:$0xf]
    %v259 = vld [vmem:[#allocation5 + $0x468] sm:$0xff]
    %v260 = vld [vmem:[#allocation5 + $0x470] sm:$0xf]
    %v261 = vld [vmem:[#allocation5 + $0x474] sm:$0xff]
    %v262 = vld [vmem:[#allocation5 + $0x47c] sm:$0xf]
    %v263 = vld [vmem:[#allocation5 + $0x480] sm:$0xff]
    %v264 = vld [vmem:[#allocation5 + $0x488] sm:$0xf]
    %v265 = vld [vmem:[#allocation5 + $0x48c] sm:$0xff]
    %v266 = vld [vmem:[#allocation5 + $0x494] sm:$0xf]
    %v267 = vld [vmem:[#allocation5 + $0x498] sm:$0xff]
    %v268 = vld [vmem:[#allocation5 + $0x4a0] sm:$0xf]
    %v269 = vld [vmem:[#allocation5 + $0x4a4] sm:$0xff]
    %v270 = vld [vmem:[#allocation5 + $0x4ac] sm:$0xf]
    %v271 = vld [vmem:[#allocation5 + $0x4b0] sm:$0xff]
    %v272 = vld [vmem:[#allocation5 + $0x4b8] sm:$0xf]
    %v273 = vld [vmem:[#allocation5 + $0x4bc] sm:$0xff]
    %v274 = vld [vmem:[#allocation5 + $0x4c4] sm:$0xf]
    %v275 = vld [vmem:[#allocation5 + $0x4c8] sm:$0xff]
    %v276 = vld [vmem:[#allocation5 + $0x4d0] sm:$0xf]
    %v277 = vld [vmem:[#allocation5 + $0x4d4] sm:$0xff]
    %v278 = vld [vmem:[#allocation5 + $0x4dc] sm:$0xf]
    %v279 = vld [vmem:[#allocation5 + $0x4e0] sm:$0xff]
    %v280 = vld [vmem:[#allocation5 + $0x4e8] sm:$0xf]
    %v281 = vld [vmem:[#allocation5 + $0x4ec] sm:$0xff]
    %v282 = vld [vmem:[#allocation5 + $0x4f4] sm:$0xf]
    %v283 = vld [vmem:[#allocation5 + $0x4f8] sm:$0xff]
    %v284 = vld [vmem:[#allocation5 + $0x500] sm:$0xf]
    %v285 = vld [vmem:[#allocation5 + $0x504] sm:$0xff]
    %v286 = vld [vmem:[#allocation5 + $0x50c] sm:$0xf]
    %v287 = vld [vmem:[#allocation5 + $0x510] sm:$0xff]
    %v288 = vld [vmem:[#allocation5 + $0x518] sm:$0xf]
    %v289 = vld [vmem:[#allocation5 + $0x51c] sm:$0xff]
    %v290 = vld [vmem:[#allocation5 + $0x524] sm:$0xf]
    %v291 = vld [vmem:[#allocation5 + $0x528] sm:$0xff]
    %v292 = vld [vmem:[#allocation5 + $0x530] sm:$0xf]
    %v293 = vld [vmem:[#allocation5 + $0x534] sm:$0xff]
    %v294 = vld [vmem:[#allocation5 + $0x53c] sm:$0xf]
    %v295 = vld [vmem:[#allocation5 + $0x540] sm:$0xff]
    %v296 = vld [vmem:[#allocation5 + $0x548] sm:$0xf]
    %v297 = vld [vmem:[#allocation5 + $0x54c] sm:$0xff]
    %v298 = vld [vmem:[#allocation5 + $0x554] sm:$0xf]
    %v299 = vld [vmem:[#allocation5 + $0x558] sm:$0xff]
    %v300 = vld [vmem:[#allocation5 + $0x560] sm:$0xf]
    %v301 = vld [vmem:[#allocation5 + $0x564] sm:$0xff]
    %v302 = vld [vmem:[#allocation5 + $0x56c] sm:$0xf]
    %v303 = vld [vmem:[#allocation5 + $0x570] sm:$0xff]
    %v304 = vld [vmem:[#allocation5 + $0x578] sm:$0xf]
    %v305 = vld [vmem:[#allocation5 + $0x57c] sm:$0xff]
    %v306 = vld [vmem:[#allocation5 + $0x584] sm:$0xf]
    %v307 = vld [vmem:[#allocation5 + $0x588] sm:$0xff]
    %v308 = vld [vmem:[#allocation5 + $0x590] sm:$0xf]
    %v309 = vld [vmem:[#allocation5 + $0x594] sm:$0xff]
    %v310 = vld [vmem:[#allocation5 + $0x59c] sm:$0xf]
    %v311 = vld [vmem:[#allocation5 + $0x5a0] sm:$0xff]
    %v312 = vld [vmem:[#allocation5 + $0x5a8] sm:$0xf]
    %v313 = vld [vmem:[#allocation5 + $0x5ac] sm:$0xff]
    %v314 = vld [vmem:[#allocation5 + $0x5b4] sm:$0xf]
    %v315 = vld [vmem:[#allocation5 + $0x5b8] sm:$0xff]
    %v316 = vld [vmem:[#allocation5 + $0x5c0] sm:$0xf]
    %v317 = vld [vmem:[#allocation5 + $0x5c4] sm:$0xff]
    %v318 = vld [vmem:[#allocation5 + $0x5cc] sm:$0xf]
    %v319 = vld [vmem:[#allocation5 + $0x5d0] sm:$0xff]
    %v320 = vld [vmem:[#allocation5 + $0x5d8] sm:$0xf]
    %v321 = vld [vmem:[#allocation5 + $0x5dc] sm:$0xff]
    %v322 = vld [vmem:[#allocation5 + $0x5e4] sm:$0xf]
    %v323 = vld [vmem:[#allocation5 + $0x5e8] sm:$0xff]
    %v324 = vld [vmem:[#allocation5 + $0x5f0] sm:$0xf]
    %v325 = vld [vmem:[#allocation5 + $0x5f4] sm:$0xff]
    %v326 = vld [vmem:[#allocation5 + $0x5fc] sm:$0xf]
    %v327 = vld [vmem:[%s2] sm:$0x7]
    %v329 = vlaneseq
    %v330 = vshrl.u32 %v329, 7
    %v331 = vsub.s32 0, %v330
    %v332 = vrot.slane %v327, %v331
    %v333 = vlaneseq
    %v334 = vshrl.u32 %v333, 7
    %v335 = vsub.s32 1, %v334
    %v336 = vrot.slane %v327, %v335
    %v337 = vlaneseq
    %v338 = vshrl.u32 %v337, 7
    %v339 = vsub.s32 2, %v338
    %v340 = vrot.slane %v327, %v339
    %v352 = vunpack.c.l.b16 %v63
    %v353 = vunpack.c.h.b16 %v63
    %v354 = vunpack.c.l.b16 %v64
    %v355 = vunpack.c.h.b16 %v64
    %v356 = vunpack.c.l.b16 %v65
    %v357 = vunpack.c.h.b16 %v65
    %v358 = vunpack.c.l.b16 %v66
    %v359 = vunpack.c.h.b16 %v66
    %v360 = vunpack.c.l.b16 %v67
    %v361 = vunpack.c.h.b16 %v67
    %v362 = vunpack.c.l.b16 %v68
    %v363 = vunpack.c.h.b16 %v68
    %v364 = vunpack.c.l.b16 %v69
    %v365 = vunpack.c.h.b16 %v69
    %v366 = vunpack.c.l.b16 %v70
    %v367 = vunpack.c.h.b16 %v70
    %v368 = vpack.c.b16 %v360, %v352
    %v369 = vpack.c.b16 %v361, %v353
    %v370 = vpack.c.b16 %v362, %v354
    %v371 = vpack.c.b16 %v363, %v355
    %v372 = vpack.c.b16 %v364, %v356
    %v373 = vpack.c.b16 %v365, %v357
    %v374 = vpack.c.b16 %v366, %v358
    %v375 = vpack.c.b16 %v367, %v359
    %v640 = vunpack.c.l.b16 %v71
    %v641 = vunpack.c.h.b16 %v71
    %v642 = vunpack.c.l.b16 %v72
    %v643 = vunpack.c.l.b16 %v73
    %v644 = vunpack.c.h.b16 %v73
    %v645 = vunpack.c.l.b16 %v74
    %v646 = vunpack.c.l.b16 %v75
    %v647 = vunpack.c.h.b16 %v75
    %v648 = vunpack.c.l.b16 %v76
    %v649 = vunpack.c.l.b16 %v77
    %v650 = vunpack.c.h.b16 %v77
    %v651 = vunpack.c.l.b16 %v78
    %v652 = vunpack.c.l.b16 %v79
    %v653 = vunpack.c.h.b16 %v79
    %v654 = vunpack.c.l.b16 %v80
    %v655 = vunpack.c.l.b16 %v81
    %v656 = vunpack.c.h.b16 %v81
    %v657 = vunpack.c.l.b16 %v82
    %v658 = vunpack.c.l.b16 %v83
    %v659 = vunpack.c.h.b16 %v83
    %v660 = vunpack.c.l.b16 %v84
    %v661 = vunpack.c.l.b16 %v85
    %v662 = vunpack.c.h.b16 %v85
    %v663 = vunpack.c.l.b16 %v86
    %v664 = vunpack.c.l.b16 %v87
    %v665 = vunpack.c.h.b16 %v87
    %v666 = vunpack.c.l.b16 %v88
    %v667 = vunpack.c.l.b16 %v89
    %v668 = vunpack.c.h.b16 %v89
    %v669 = vunpack.c.l.b16 %v90
    %v670 = vunpack.c.l.b16 %v91
    %v671 = vunpack.c.h.b16 %v91
    %v672 = vunpack.c.l.b16 %v92
    %v673 = vunpack.c.l.b16 %v93
    %v674 = vunpack.c.h.b16 %v93
    %v675 = vunpack.c.l.b16 %v94
    %v676 = vunpack.c.l.b16 %v95
    %v677 = vunpack.c.h.b16 %v95
    %v678 = vunpack.c.l.b16 %v96
    %v679 = vunpack.c.l.b16 %v97
    %v680 = vunpack.c.h.b16 %v97
    %v681 = vunpack.c.l.b16 %v98
    %v682 = vunpack.c.l.b16 %v99
    %v683 = vunpack.c.h.b16 %v99
    %v684 = vunpack.c.l.b16 %v100
    %v685 = vunpack.c.l.b16 %v101
    %v686 = vunpack.c.h.b16 %v101
    %v687 = vunpack.c.l.b16 %v102
    %v688 = vunpack.c.l.b16 %v103
    %v689 = vunpack.c.h.b16 %v103
    %v690 = vunpack.c.l.b16 %v104
    %v691 = vunpack.c.l.b16 %v105
    %v692 = vunpack.c.h.b16 %v105
    %v693 = vunpack.c.l.b16 %v106
    %v694 = vunpack.c.l.b16 %v107
    %v695 = vunpack.c.h.b16 %v107
    %v696 = vunpack.c.l.b16 %v108
    %v697 = vunpack.c.l.b16 %v109
    %v698 = vunpack.c.h.b16 %v109
    %v699 = vunpack.c.l.b16 %v110
    %v700 = vunpack.c.l.b16 %v111
    %v701 = vunpack.c.h.b16 %v111
    %v702 = vunpack.c.l.b16 %v112
    %v703 = vunpack.c.l.b16 %v113
    %v704 = vunpack.c.h.b16 %v113
    %v705 = vunpack.c.l.b16 %v114
    %v706 = vunpack.c.l.b16 %v115
    %v707 = vunpack.c.h.b16 %v115
    %v708 = vunpack.c.l.b16 %v116
    %v709 = vunpack.c.l.b16 %v117
    %v710 = vunpack.c.h.b16 %v117
    %v711 = vunpack.c.l.b16 %v118
    %v712 = vunpack.c.l.b16 %v119
    %v713 = vunpack.c.h.b16 %v119
    %v714 = vunpack.c.l.b16 %v120
    %v715 = vunpack.c.l.b16 %v121
    %v716 = vunpack.c.h.b16 %v121
    %v717 = vunpack.c.l.b16 %v122
    %v718 = vunpack.c.l.b16 %v123
    %v719 = vunpack.c.h.b16 %v123
    %v720 = vunpack.c.l.b16 %v124
    %v721 = vunpack.c.l.b16 %v125
    %v722 = vunpack.c.h.b16 %v125
    %v723 = vunpack.c.l.b16 %v126
    %v724 = vunpack.c.l.b16 %v127
    %v725 = vunpack.c.h.b16 %v127
    %v726 = vunpack.c.l.b16 %v128
    %v727 = vunpack.c.l.b16 %v129
    %v728 = vunpack.c.h.b16 %v129
    %v729 = vunpack.c.l.b16 %v130
    %v730 = vunpack.c.l.b16 %v131
    %v731 = vunpack.c.h.b16 %v131
    %v732 = vunpack.c.l.b16 %v132
    %v733 = vunpack.c.l.b16 %v133
    %v734 = vunpack.c.h.b16 %v133
    %v735 = vunpack.c.l.b16 %v134
    %v736 = vunpack.c.l.b16 %v135
    %v737 = vunpack.c.h.b16 %v135
    %v738 = vunpack.c.l.b16 %v136
    %v739 = vunpack.c.l.b16 %v137
    %v740 = vunpack.c.h.b16 %v137
    %v741 = vunpack.c.l.b16 %v138
    %v742 = vunpack.c.l.b16 %v139
    %v743 = vunpack.c.h.b16 %v139
    %v744 = vunpack.c.l.b16 %v140
    %v745 = vunpack.c.l.b16 %v141
    %v746 = vunpack.c.h.b16 %v141
    %v747 = vunpack.c.l.b16 %v142
    %v748 = vunpack.c.l.b16 %v143
    %v749 = vunpack.c.h.b16 %v143
    %v750 = vunpack.c.l.b16 %v144
    %v751 = vunpack.c.l.b16 %v145
    %v752 = vunpack.c.h.b16 %v145
    %v753 = vunpack.c.l.b16 %v146
    %v754 = vunpack.c.l.b16 %v147
    %v755 = vunpack.c.h.b16 %v147
    %v756 = vunpack.c.l.b16 %v148
    %v757 = vunpack.c.l.b16 %v149
    %v758 = vunpack.c.h.b16 %v149
    %v759 = vunpack.c.l.b16 %v150
    %v760 = vunpack.c.l.b16 %v151
    %v761 = vunpack.c.h.b16 %v151
    %v762 = vunpack.c.l.b16 %v152
    %v763 = vunpack.c.l.b16 %v153
    %v764 = vunpack.c.h.b16 %v153
    %v765 = vunpack.c.l.b16 %v154
    %v766 = vunpack.c.l.b16 %v155
    %v767 = vunpack.c.h.b16 %v155
    %v768 = vunpack.c.l.b16 %v156
    %v769 = vunpack.c.l.b16 %v157
    %v770 = vunpack.c.h.b16 %v157
    %v771 = vunpack.c.l.b16 %v158
    %v772 = vunpack.c.l.b16 %v159
    %v773 = vunpack.c.h.b16 %v159
    %v774 = vunpack.c.l.b16 %v160
    %v775 = vunpack.c.l.b16 %v161
    %v776 = vunpack.c.h.b16 %v161
    %v777 = vunpack.c.l.b16 %v162
    %v778 = vunpack.c.l.b16 %v163
    %v779 = vunpack.c.h.b16 %v163
    %v780 = vunpack.c.l.b16 %v164
    %v781 = vunpack.c.l.b16 %v165
    %v782 = vunpack.c.h.b16 %v165
    %v783 = vunpack.c.l.b16 %v166
    %v784 = vunpack.c.l.b16 %v167
    %v785 = vunpack.c.h.b16 %v167
    %v786 = vunpack.c.l.b16 %v168
    %v787 = vunpack.c.l.b16 %v169
    %v788 = vunpack.c.h.b16 %v169
    %v789 = vunpack.c.l.b16 %v170
    %v790 = vunpack.c.l.b16 %v171
    %v791 = vunpack.c.h.b16 %v171
    %v792 = vunpack.c.l.b16 %v172
    %v793 = vunpack.c.l.b16 %v173
    %v794 = vunpack.c.h.b16 %v173
    %v795 = vunpack.c.l.b16 %v174
    %v796 = vunpack.c.l.b16 %v175
    %v797 = vunpack.c.h.b16 %v175
    %v798 = vunpack.c.l.b16 %v176
    %v799 = vunpack.c.l.b16 %v177
    %v800 = vunpack.c.h.b16 %v177
    %v801 = vunpack.c.l.b16 %v178
    %v802 = vunpack.c.l.b16 %v179
    %v803 = vunpack.c.h.b16 %v179
    %v804 = vunpack.c.l.b16 %v180
    %v805 = vunpack.c.l.b16 %v181
    %v806 = vunpack.c.h.b16 %v181
    %v807 = vunpack.c.l.b16 %v182
    %v808 = vunpack.c.l.b16 %v183
    %v809 = vunpack.c.h.b16 %v183
    %v810 = vunpack.c.l.b16 %v184
    %v811 = vunpack.c.l.b16 %v185
    %v812 = vunpack.c.h.b16 %v185
    %v813 = vunpack.c.l.b16 %v186
    %v814 = vunpack.c.l.b16 %v187
    %v815 = vunpack.c.h.b16 %v187
    %v816 = vunpack.c.l.b16 %v188
    %v817 = vunpack.c.l.b16 %v189
    %v818 = vunpack.c.h.b16 %v189
    %v819 = vunpack.c.l.b16 %v190
    %v820 = vunpack.c.l.b16 %v191
    %v821 = vunpack.c.h.b16 %v191
    %v822 = vunpack.c.l.b16 %v192
    %v823 = vunpack.c.l.b16 %v193
    %v824 = vunpack.c.h.b16 %v193
    %v825 = vunpack.c.l.b16 %v194
    %v826 = vunpack.c.l.b16 %v195
    %v827 = vunpack.c.h.b16 %v195
    %v828 = vunpack.c.l.b16 %v196
    %v829 = vunpack.c.l.b16 %v197
    %v830 = vunpack.c.h.b16 %v197
    %v831 = vunpack.c.l.b16 %v198
    %v832 = vunpack.c.l.b16 %v199
    %v833 = vunpack.c.h.b16 %v199
    %v834 = vunpack.c.l.b16 %v200
    %v835 = vunpack.c.l.b16 %v201
    %v836 = vunpack.c.h.b16 %v201
    %v837 = vunpack.c.l.b16 %v202
    %v838 = vunpack.c.l.b16 %v203
    %v839 = vunpack.c.h.b16 %v203
    %v840 = vunpack.c.l.b16 %v204
    %v841 = vunpack.c.l.b16 %v205
    %v842 = vunpack.c.h.b16 %v205
    %v843 = vunpack.c.l.b16 %v206
    %v844 = vunpack.c.l.b16 %v207
    %v845 = vunpack.c.h.b16 %v207
    %v846 = vunpack.c.l.b16 %v208
    %v847 = vunpack.c.l.b16 %v209
    %v848 = vunpack.c.h.b16 %v209
    %v849 = vunpack.c.l.b16 %v210
    %v850 = vunpack.c.l.b16 %v211
    %v851 = vunpack.c.h.b16 %v211
    %v852 = vunpack.c.l.b16 %v212
    %v853 = vunpack.c.l.b16 %v213
    %v854 = vunpack.c.h.b16 %v213
    %v855 = vunpack.c.l.b16 %v214
    %v856 = vunpack.c.l.b16 %v215
    %v857 = vunpack.c.h.b16 %v215
    %v858 = vunpack.c.l.b16 %v216
    %v859 = vunpack.c.l.b16 %v217
    %v860 = vunpack.c.h.b16 %v217
    %v861 = vunpack.c.l.b16 %v218
    %v862 = vunpack.c.l.b16 %v219
    %v863 = vunpack.c.h.b16 %v219
    %v864 = vunpack.c.l.b16 %v220
    %v865 = vunpack.c.l.b16 %v221
    %v866 = vunpack.c.h.b16 %v221
    %v867 = vunpack.c.l.b16 %v222
    %v868 = vunpack.c.l.b16 %v223
    %v869 = vunpack.c.h.b16 %v223
    %v870 = vunpack.c.l.b16 %v224
    %v871 = vunpack.c.l.b16 %v225
    %v872 = vunpack.c.h.b16 %v225
    %v873 = vunpack.c.l.b16 %v226
    %v874 = vunpack.c.l.b16 %v227
    %v875 = vunpack.c.h.b16 %v227
    %v876 = vunpack.c.l.b16 %v228
    %v877 = vunpack.c.l.b16 %v229
    %v878 = vunpack.c.h.b16 %v229
    %v879 = vunpack.c.l.b16 %v230
    %v880 = vunpack.c.l.b16 %v231
    %v881 = vunpack.c.h.b16 %v231
    %v882 = vunpack.c.l.b16 %v232
    %v883 = vunpack.c.l.b16 %v233
    %v884 = vunpack.c.h.b16 %v233
    %v885 = vunpack.c.l.b16 %v234
    %v886 = vunpack.c.l.b16 %v235
    %v887 = vunpack.c.h.b16 %v235
    %v888 = vunpack.c.l.b16 %v236
    %v889 = vunpack.c.l.b16 %v237
    %v890 = vunpack.c.h.b16 %v237
    %v891 = vunpack.c.l.b16 %v238
    %v892 = vunpack.c.l.b16 %v239
    %v893 = vunpack.c.h.b16 %v239
    %v894 = vunpack.c.l.b16 %v240
    %v895 = vunpack.c.l.b16 %v241
    %v896 = vunpack.c.h.b16 %v241
    %v897 = vunpack.c.l.b16 %v242
    %v898 = vunpack.c.l.b16 %v243
    %v899 = vunpack.c.h.b16 %v243
    %v900 = vunpack.c.l.b16 %v244
    %v901 = vunpack.c.l.b16 %v245
    %v902 = vunpack.c.h.b16 %v245
    %v903 = vunpack.c.l.b16 %v246
    %v904 = vunpack.c.l.b16 %v247
    %v905 = vunpack.c.h.b16 %v247
    %v906 = vunpack.c.l.b16 %v248
    %v907 = vunpack.c.l.b16 %v249
    %v908 = vunpack.c.h.b16 %v249
    %v909 = vunpack.c.l.b16 %v250
    %v910 = vunpack.c.l.b16 %v251
    %v911 = vunpack.c.h.b16 %v251
    %v912 = vunpack.c.l.b16 %v252
    %v913 = vunpack.c.l.b16 %v253
    %v914 = vunpack.c.h.b16 %v253
    %v915 = vunpack.c.l.b16 %v254
    %v916 = vunpack.c.l.b16 %v255
    %v917 = vunpack.c.h.b16 %v255
    %v918 = vunpack.c.l.b16 %v256
    %v919 = vunpack.c.l.b16 %v257
    %v920 = vunpack.c.h.b16 %v257
    %v921 = vunpack.c.l.b16 %v258
    %v922 = vunpack.c.l.b16 %v259
    %v923 = vunpack.c.h.b16 %v259
    %v924 = vunpack.c.l.b16 %v260
    %v925 = vunpack.c.l.b16 %v261
    %v926 = vunpack.c.h.b16 %v261
    %v927 = vunpack.c.l.b16 %v262
    %v928 = vunpack.c.l.b16 %v263
    %v929 = vunpack.c.h.b16 %v263
    %v930 = vunpack.c.l.b16 %v264
    %v931 = vunpack.c.l.b16 %v265
    %v932 = vunpack.c.h.b16 %v265
    %v933 = vunpack.c.l.b16 %v266
    %v934 = vunpack.c.l.b16 %v267
    %v935 = vunpack.c.h.b16 %v267
    %v936 = vunpack.c.l.b16 %v268
    %v937 = vunpack.c.l.b16 %v269
    %v938 = vunpack.c.h.b16 %v269
    %v939 = vunpack.c.l.b16 %v270
    %v940 = vunpack.c.l.b16 %v271
    %v941 = vunpack.c.h.b16 %v271
    %v942 = vunpack.c.l.b16 %v272
    %v943 = vunpack.c.l.b16 %v273
    %v944 = vunpack.c.h.b16 %v273
    %v945 = vunpack.c.l.b16 %v274
    %v946 = vunpack.c.l.b16 %v275
    %v947 = vunpack.c.h.b16 %v275
    %v948 = vunpack.c.l.b16 %v276
    %v949 = vunpack.c.l.b16 %v277
    %v950 = vunpack.c.h.b16 %v277
    %v951 = vunpack.c.l.b16 %v278
    %v952 = vunpack.c.l.b16 %v279
    %v953 = vunpack.c.h.b16 %v279
    %v954 = vunpack.c.l.b16 %v280
    %v955 = vunpack.c.l.b16 %v281
    %v956 = vunpack.c.h.b16 %v281
    %v957 = vunpack.c.l.b16 %v282
    %v958 = vunpack.c.l.b16 %v283
    %v959 = vunpack.c.h.b16 %v283
    %v960 = vunpack.c.l.b16 %v284
    %v961 = vunpack.c.l.b16 %v285
    %v962 = vunpack.c.h.b16 %v285
    %v963 = vunpack.c.l.b16 %v286
    %v964 = vunpack.c.l.b16 %v287
    %v965 = vunpack.c.h.b16 %v287
    %v966 = vunpack.c.l.b16 %v288
    %v967 = vunpack.c.l.b16 %v289
    %v968 = vunpack.c.h.b16 %v289
    %v969 = vunpack.c.l.b16 %v290
    %v970 = vunpack.c.l.b16 %v291
    %v971 = vunpack.c.h.b16 %v291
    %v972 = vunpack.c.l.b16 %v292
    %v973 = vunpack.c.l.b16 %v293
    %v974 = vunpack.c.h.b16 %v293
    %v975 = vunpack.c.l.b16 %v294
    %v976 = vunpack.c.l.b16 %v295
    %v977 = vunpack.c.h.b16 %v295
    %v978 = vunpack.c.l.b16 %v296
    %v979 = vunpack.c.l.b16 %v297
    %v980 = vunpack.c.h.b16 %v297
    %v981 = vunpack.c.l.b16 %v298
    %v982 = vunpack.c.l.b16 %v299
    %v983 = vunpack.c.h.b16 %v299
    %v984 = vunpack.c.l.b16 %v300
    %v985 = vunpack.c.l.b16 %v301
    %v986 = vunpack.c.h.b16 %v301
    %v987 = vunpack.c.l.b16 %v302
    %v988 = vunpack.c.l.b16 %v303
    %v989 = vunpack.c.h.b16 %v303
    %v990 = vunpack.c.l.b16 %v304
    %v991 = vunpack.c.l.b16 %v305
    %v992 = vunpack.c.h.b16 %v305
    %v993 = vunpack.c.l.b16 %v306
    %v994 = vunpack.c.l.b16 %v307
    %v995 = vunpack.c.h.b16 %v307
    %v996 = vunpack.c.l.b16 %v308
    %v997 = vunpack.c.l.b16 %v309
    %v998 = vunpack.c.h.b16 %v309
    %v999 = vunpack.c.l.b16 %v310
    %v1000 = vunpack.c.l.b16 %v311
    %v1001 = vunpack.c.h.b16 %v311
    %v1002 = vunpack.c.l.b16 %v312
    %v1003 = vunpack.c.l.b16 %v313
    %v1004 = vunpack.c.h.b16 %v313
    %v1005 = vunpack.c.l.b16 %v314
    %v1006 = vunpack.c.l.b16 %v315
    %v1007 = vunpack.c.h.b16 %v315
    %v1008 = vunpack.c.l.b16 %v316
    %v1009 = vunpack.c.l.b16 %v317
    %v1010 = vunpack.c.h.b16 %v317
    %v1011 = vunpack.c.l.b16 %v318
    %v1012 = vunpack.c.l.b16 %v319
    %v1013 = vunpack.c.h.b16 %v319
    %v1014 = vunpack.c.l.b16 %v320
    %v1015 = vunpack.c.l.b16 %v321
    %v1016 = vunpack.c.h.b16 %v321
    %v1017 = vunpack.c.l.b16 %v322
    %v1018 = vunpack.c.l.b16 %v323
    %v1019 = vunpack.c.h.b16 %v323
    %v1020 = vunpack.c.l.b16 %v324
    %v1021 = vunpack.c.l.b16 %v325
    %v1022 = vunpack.c.h.b16 %v325
    %v1023 = vunpack.c.l.b16 %v326
    %v1024 = vpack.c.b16 %v643, %v640
    %v1025 = vpack.c.b16 %v644, %v641
    %v1026 = vpack.c.b16 %v645, %v642
    %v1027 = vpack.c.b16 %v649, %v646
    %v1028 = vpack.c.b16 %v650, %v647
    %v1029 = vpack.c.b16 %v651, %v648
    %v1030 = vpack.c.b16 %v655, %v652
    %v1031 = vpack.c.b16 %v656, %v653
    %v1032 = vpack.c.b16 %v657, %v654
    %v1033 = vpack.c.b16 %v661, %v658
    %v1034 = vpack.c.b16 %v662, %v659
    %v1035 = vpack.c.b16 %v663, %v660
    %v1036 = vpack.c.b16 %v667, %v664
    %v1037 = vpack.c.b16 %v668, %v665
    %v1038 = vpack.c.b16 %v669, %v666
    %v1039 = vpack.c.b16 %v673, %v670
    %v1040 = vpack.c.b16 %v674, %v671
    %v1041 = vpack.c.b16 %v675, %v672
    %v1042 = vpack.c.b16 %v679, %v676
    %v1043 = vpack.c.b16 %v680, %v677
    %v1044 = vpack.c.b16 %v681, %v678
    %v1045 = vpack.c.b16 %v685, %v682
    %v1046 = vpack.c.b16 %v686, %v683
    %v1047 = vpack.c.b16 %v687, %v684
    %v1048 = vpack.c.b16 %v691, %v688
    %v1049 = vpack.c.b16 %v692, %v689
    %v1050 = vpack.c.b16 %v693, %v690
    %v1051 = vpack.c.b16 %v697, %v694
    %v1052 = vpack.c.b16 %v698, %v695
    %v1053 = vpack.c.b16 %v699, %v696
    %v1054 = vpack.c.b16 %v703, %v700
    %v1055 = vpack.c.b16 %v704, %v701
    %v1056 = vpack.c.b16 %v705, %v702
    %v1057 = vpack.c.b16 %v709, %v706
    %v1058 = vpack.c.b16 %v710, %v707
    %v1059 = vpack.c.b16 %v711, %v708
    %v1060 = vpack.c.b16 %v715, %v712
    %v1061 = vpack.c.b16 %v716, %v713
    %v1062 = vpack.c.b16 %v717, %v714
    %v1063 = vpack.c.b16 %v721, %v718
    %v1064 = vpack.c.b16 %v722, %v719
    %v1065 = vpack.c.b16 %v723, %v720
    %v1066 = vpack.c.b16 %v727, %v724
    %v1067 = vpack.c.b16 %v728, %v725
    %v1068 = vpack.c.b16 %v729, %v726
    %v1069 = vpack.c.b16 %v733, %v730
    %v1070 = vpack.c.b16 %v734, %v731
    %v1071 = vpack.c.b16 %v735, %v732
    %v1072 = vpack.c.b16 %v739, %v736
    %v1073 = vpack.c.b16 %v740, %v737
    %v1074 = vpack.c.b16 %v741, %v738
    %v1075 = vpack.c.b16 %v745, %v742
    %v1076 = vpack.c.b16 %v746, %v743
    %v1077 = vpack.c.b16 %v747, %v744
    %v1078 = vpack.c.b16 %v751, %v748
    %v1079 = vpack.c.b16 %v752, %v749
    %v1080 = vpack.c.b16 %v753, %v750
    %v1081 = vpack.c.b16 %v757, %v754
    %v1082 = vpack.c.b16 %v758, %v755
    %v1083 = vpack.c.b16 %v759, %v756
    %v1084 = vpack.c.b16 %v763, %v760
    %v1085 = vpack.c.b16 %v764, %v761
    %v1086 = vpack.c.b16 %v765, %v762
    %v1087 = vpack.c.b16 %v769, %v766
    %v1088 = vpack.c.b16 %v770, %v767
    %v1089 = vpack.c.b16 %v771, %v768
    %v1090 = vpack.c.b16 %v775, %v772
    %v1091 = vpack.c.b16 %v776, %v773
    %v1092 = vpack.c.b16 %v777, %v774
    %v1093 = vpack.c.b16 %v781, %v778
    %v1094 = vpack.c.b16 %v782, %v779
    %v1095 = vpack.c.b16 %v783, %v780
    %v1096 = vpack.c.b16 %v787, %v784
    %v1097 = vpack.c.b16 %v788, %v785
    %v1098 = vpack.c.b16 %v789, %v786
    %v1099 = vpack.c.b16 %v793, %v790
    %v1100 = vpack.c.b16 %v794, %v791
    %v1101 = vpack.c.b16 %v795, %v792
    %v1102 = vpack.c.b16 %v799, %v796
    %v1103 = vpack.c.b16 %v800, %v797
    %v1104 = vpack.c.b16 %v801, %v798
    %v1105 = vpack.c.b16 %v805, %v802
    %v1106 = vpack.c.b16 %v806, %v803
    %v1107 = vpack.c.b16 %v807, %v804
    %v1108 = vpack.c.b16 %v811, %v808
    %v1109 = vpack.c.b16 %v812, %v809
    %v1110 = vpack.c.b16 %v813, %v810
    %v1111 = vpack.c.b16 %v817, %v814
    %v1112 = vpack.c.b16 %v818, %v815
    %v1113 = vpack.c.b16 %v819, %v816
    %v1114 = vpack.c.b16 %v823, %v820
    %v1115 = vpack.c.b16 %v824, %v821
    %v1116 = vpack.c.b16 %v825, %v822
    %v1117 = vpack.c.b16 %v829, %v826
    %v1118 = vpack.c.b16 %v830, %v827
    %v1119 = vpack.c.b16 %v831, %v828
    %v1120 = vpack.c.b16 %v835, %v832
    %v1121 = vpack.c.b16 %v836, %v833
    %v1122 = vpack.c.b16 %v837, %v834
    %v1123 = vpack.c.b16 %v841, %v838
    %v1124 = vpack.c.b16 %v842, %v839
    %v1125 = vpack.c.b16 %v843, %v840
    %v1126 = vpack.c.b16 %v847, %v844
    %v1127 = vpack.c.b16 %v848, %v845
    %v1128 = vpack.c.b16 %v849, %v846
    %v1129 = vpack.c.b16 %v853, %v850
    %v1130 = vpack.c.b16 %v854, %v851
    %v1131 = vpack.c.b16 %v855, %v852
    %v1132 = vpack.c.b16 %v859, %v856
    %v1133 = vpack.c.b16 %v860, %v857
    %v1134 = vpack.c.b16 %v861, %v858
    %v1135 = vpack.c.b16 %v865, %v862
    %v1136 = vpack.c.b16 %v866, %v863
    %v1137 = vpack.c.b16 %v867, %v864
    %v1138 = vpack.c.b16 %v871, %v868
    %v1139 = vpack.c.b16 %v872, %v869
    %v1140 = vpack.c.b16 %v873, %v870
    %v1141 = vpack.c.b16 %v877, %v874
    %v1142 = vpack.c.b16 %v878, %v875
    %v1143 = vpack.c.b16 %v879, %v876
    %v1144 = vpack.c.b16 %v883, %v880
    %v1145 = vpack.c.b16 %v884, %v881
    %v1146 = vpack.c.b16 %v885, %v882
    %v1147 = vpack.c.b16 %v889, %v886
    %v1148 = vpack.c.b16 %v890, %v887
    %v1149 = vpack.c.b16 %v891, %v888
    %v1150 = vpack.c.b16 %v895, %v892
    %v1151 = vpack.c.b16 %v896, %v893
    %v1152 = vpack.c.b16 %v897, %v894
    %v1153 = vpack.c.b16 %v901, %v898
    %v1154 = vpack.c.b16 %v902, %v899
    %v1155 = vpack.c.b16 %v903, %v900
    %v1156 = vpack.c.b16 %v907, %v904
    %v1157 = vpack.c.b16 %v908, %v905
    %v1158 = vpack.c.b16 %v909, %v906
    %v1159 = vpack.c.b16 %v913, %v910
    %v1160 = vpack.c.b16 %v914, %v911
    %v1161 = vpack.c.b16 %v915, %v912
    %v1162 = vpack.c.b16 %v919, %v916
    %v1163 = vpack.c.b16 %v920, %v917
    %v1164 = vpack.c.b16 %v921, %v918
    %v1165 = vpack.c.b16 %v925, %v922
    %v1166 = vpack.c.b16 %v926, %v923
    %v1167 = vpack.c.b16 %v927, %v924
    %v1168 = vpack.c.b16 %v931, %v928
    %v1169 = vpack.c.b16 %v932, %v929
    %v1170 = vpack.c.b16 %v933, %v930
    %v1171 = vpack.c.b16 %v937, %v934
    %v1172 = vpack.c.b16 %v938, %v935
    %v1173 = vpack.c.b16 %v939, %v936
    %v1174 = vpack.c.b16 %v943, %v940
    %v1175 = vpack.c.b16 %v944, %v941
    %v1176 = vpack.c.b16 %v945, %v942
    %v1177 = vpack.c.b16 %v949, %v946
    %v1178 = vpack.c.b16 %v950, %v947
    %v1179 = vpack.c.b16 %v951, %v948
    %v1180 = vpack.c.b16 %v955, %v952
    %v1181 = vpack.c.b16 %v956, %v953
    %v1182 = vpack.c.b16 %v957, %v954
    %v1183 = vpack.c.b16 %v961, %v958
    %v1184 = vpack.c.b16 %v962, %v959
    %v1185 = vpack.c.b16 %v963, %v960
    %v1186 = vpack.c.b16 %v967, %v964
    %v1187 = vpack.c.b16 %v968, %v965
    %v1188 = vpack.c.b16 %v969, %v966
    %v1189 = vpack.c.b16 %v973, %v970
    %v1190 = vpack.c.b16 %v974, %v971
    %v1191 = vpack.c.b16 %v975, %v972
    %v1192 = vpack.c.b16 %v979, %v976
    %v1193 = vpack.c.b16 %v980, %v977
    %v1194 = vpack.c.b16 %v981, %v978
    %v1195 = vpack.c.b16 %v985, %v982
    %v1196 = vpack.c.b16 %v986, %v983
    %v1197 = vpack.c.b16 %v987, %v984
    %v1198 = vpack.c.b16 %v991, %v988
    %v1199 = vpack.c.b16 %v992, %v989
    %v1200 = vpack.c.b16 %v993, %v990
    %v1201 = vpack.c.b16 %v997, %v994
    %v1202 = vpack.c.b16 %v998, %v995
    %v1203 = vpack.c.b16 %v999, %v996
    %v1204 = vpack.c.b16 %v1003, %v1000
    %v1205 = vpack.c.b16 %v1004, %v1001
    %v1206 = vpack.c.b16 %v1005, %v1002
    %v1207 = vpack.c.b16 %v1009, %v1006
    %v1208 = vpack.c.b16 %v1010, %v1007
    %v1209 = vpack.c.b16 %v1011, %v1008
    %v1210 = vpack.c.b16 %v1015, %v1012
    %v1211 = vpack.c.b16 %v1016, %v1013
    %v1212 = vpack.c.b16 %v1017, %v1014
    %v1213 = vpack.c.b16 %v1021, %v1018
    %v1214 = vpack.c.b16 %v1022, %v1019
    %v1215 = vpack.c.b16 %v1023, %v1020
    %1408 = vmatprep.subr.bf16.mxu0 %v1025
    %1409 = vmatpush1.bf16.msra.mxu0 %v1024
    %1410 = vmatprep.subr.bf16.mxu0 %v1028
    %1411 = vmatpush1.bf16.msra.mxu0 %v1027
    %1412 = vmatprep.subr.bf16.mxu0 %v1031
    %1413 = vmatpush1.bf16.msra.mxu0 %v1030
    %1414 = vmatprep.subr.bf16.mxu0 %v1034
    %1415 = vmatpush1.bf16.msra.mxu0 %v1033
    %1416 = vmatprep.subr.bf16.mxu0 %v1037
    %1417 = vmatpush1.bf16.msra.mxu0 %v1036
    %1418 = vmatprep.subr.bf16.mxu0 %v1040
    %1419 = vmatpush1.bf16.msra.mxu0 %v1039
    %1420 = vmatprep.subr.bf16.mxu0 %v1043
    %1421 = vmatpush1.bf16.msra.mxu0 %v1042
    %1422 = vmatprep.subr.bf16.mxu0 %v1046
    %1423 = vmatpush1.bf16.msra.mxu0 %v1045
    %1424 = vmatprep.subr.bf16.mxu0 %v1049
    %1425 = vmatpush1.bf16.msra.mxu0 %v1048
    %1426 = vmatprep.subr.bf16.mxu0 %v1052
    %1427 = vmatpush1.bf16.msra.mxu0 %v1051
    %1428 = vmatprep.subr.bf16.mxu0 %v1055
    %1429 = vmatpush1.bf16.msra.mxu0 %v1054
    %1430 = vmatprep.subr.bf16.mxu0 %v1058
    %1431 = vmatpush1.bf16.msra.mxu0 %v1057
    %1432 = vmatprep.subr.bf16.mxu0 %v1061
    %1433 = vmatpush1.bf16.msra.mxu0 %v1060
    %1434 = vmatprep.subr.bf16.mxu0 %v1064
    %1435 = vmatpush1.bf16.msra.mxu0 %v1063
    %1436 = vmatprep.subr.bf16.mxu0 %v1067
    %1437 = vmatpush1.bf16.msra.mxu0 %v1066
    %1438 = vmatprep.subr.bf16.mxu0 %v1070
    %1439 = vmatpush1.bf16.msra.mxu0 %v1069
    %1440 = vmatprep.mubr.bf16.mxu0 %v369
    %1441 = vmatmul.mubr.bf16.gmra.mrb[0].mxu0 %v368
    %v1442 = vpop.f32.mrb[0].mxu0
    %v1443 = vadd.f32 %v332, %v1442
    %v1444 = vpop.f32.mrb[0].mxu0
    %v1445 = vadd.f32 %v336, %v1444
    %v1446 = vpop.f32.mrb[0].mxu0
    %v1447 = vadd.f32 %v332, %v1446
    %v1448 = vpop.f32.mrb[0].mxu0
    %v1449 = vadd.f32 %v336, %v1448
    %1450 = vdwg.mxu0
    %1451 = vmatprep.subr.bf16.mxu0 %v1073
    %1452 = vmatpush1.bf16.msra.mxu0 %v1072
    %1453 = vmatprep.subr.bf16.mxu0 %v1076
    %1454 = vmatpush1.bf16.msra.mxu0 %v1075
    %1455 = vmatprep.subr.bf16.mxu0 %v1079
    %1456 = vmatpush1.bf16.msra.mxu0 %v1078
    %1457 = vmatprep.subr.bf16.mxu0 %v1082
    %1458 = vmatpush1.bf16.msra.mxu0 %v1081
    %1459 = vmatprep.subr.bf16.mxu0 %v1085
    %1460 = vmatpush1.bf16.msra.mxu0 %v1084
    %1461 = vmatprep.subr.bf16.mxu0 %v1088
    %1462 = vmatpush1.bf16.msra.mxu0 %v1087
    %1463 = vmatprep.subr.bf16.mxu0 %v1091
    %1464 = vmatpush1.bf16.msra.mxu0 %v1090
    %1465 = vmatprep.subr.bf16.mxu0 %v1094
    %1466 = vmatpush1.bf16.msra.mxu0 %v1093
    %1467 = vmatprep.subr.bf16.mxu0 %v1097
    %1468 = vmatpush1.bf16.msra.mxu0 %v1096
    %1469 = vmatprep.subr.bf16.mxu0 %v1100
    %1470 = vmatpush1.bf16.msra.mxu0 %v1099
    %1471 = vmatprep.subr.bf16.mxu0 %v1103
    %1472 = vmatpush1.bf16.msra.mxu0 %v1102
    %1473 = vmatprep.subr.bf16.mxu0 %v1106
    %1474 = vmatpush1.bf16.msra.mxu0 %v1105
    %1475 = vmatprep.subr.bf16.mxu0 %v1109
    %1476 = vmatpush1.bf16.msra.mxu0 %v1108
    %1477 = vmatprep.subr.bf16.mxu0 %v1112
    %1478 = vmatpush1.bf16.msra.mxu0 %v1111
    %1479 = vmatprep.subr.bf16.mxu0 %v1115
    %1480 = vmatpush1.bf16.msra.mxu0 %v1114
    %1481 = vmatprep.subr.bf16.mxu0 %v1118
    %1482 = vmatpush1.bf16.msra.mxu0 %v1117
    %1483 = vmatprep.mubr.bf16.mxu0 %v371
    %1484 = vmatmul.mubr.bf16.gmra.mrb[0].mxu0 %v370
    %v1485 = vpop.f32.mrb[0].mxu0
    %v1486 = vadd.f32 %v1443, %v1485
    %v1487 = vpop.f32.mrb[0].mxu0
    %v1488 = vadd.f32 %v1445, %v1487
    %v1489 = vpop.f32.mrb[0].mxu0
    %v1490 = vadd.f32 %v1447, %v1489
    %v1491 = vpop.f32.mrb[0].mxu0
    %v1492 = vadd.f32 %v1449, %v1491
    %1493 = vdwg.mxu0
    %1494 = vmatprep.subr.bf16.mxu0 %v1121
    %1495 = vmatpush1.bf16.msra.mxu0 %v1120
    %1496 = vmatprep.subr.bf16.mxu0 %v1124
    %1497 = vmatpush1.bf16.msra.mxu0 %v1123
    %1498 = vmatprep.subr.bf16.mxu0 %v1127
    %1499 = vmatpush1.bf16.msra.mxu0 %v1126
    %1500 = vmatprep.subr.bf16.mxu0 %v1130
    %1501 = vmatpush1.bf16.msra.mxu0 %v1129
    %1502 = vmatprep.subr.bf16.mxu0 %v1133
    %1503 = vmatpush1.bf16.msra.mxu0 %v1132
    %1504 = vmatprep.subr.bf16.mxu0 %v1136
    %1505 = vmatpush1.bf16.msra.mxu0 %v1135
    %1506 = vmatprep.subr.bf16.mxu0 %v1139
    %1507 = vmatpush1.bf16.msra.mxu0 %v1138
    %1508 = vmatprep.subr.bf16.mxu0 %v1142
    %1509 = vmatpush1.bf16.msra.mxu0 %v1141
    %1510 = vmatprep.subr.bf16.mxu0 %v1145
    %1511 = vmatpush1.bf16.msra.mxu0 %v1144
    %1512 = vmatprep.subr.bf16.mxu0 %v1148
    %1513 = vmatpush1.bf16.msra.mxu0 %v1147
    %1514 = vmatprep.subr.bf16.mxu0 %v1151
    %1515 = vmatpush1.bf16.msra.mxu0 %v1150
    %1516 = vmatprep.subr.bf16.mxu0 %v1154
    %1517 = vmatpush1.bf16.msra.mxu0 %v1153
    %1518 = vmatprep.subr.bf16.mxu0 %v1157
    %1519 = vmatpush1.bf16.msra.mxu0 %v1156
    %1520 = vmatprep.subr.bf16.mxu0 %v1160
    %1521 = vmatpush1.bf16.msra.mxu0 %v1159
    %1522 = vmatprep.subr.bf16.mxu0 %v1163
    %1523 = vmatpush1.bf16.msra.mxu0 %v1162
    %1524 = vmatprep.subr.bf16.mxu0 %v1166
    %1525 = vmatpush1.bf16.msra.mxu0 %v1165
    %1526 = vmatprep.mubr.bf16.mxu0 %v373
    %1527 = vmatmul.mubr.bf16.gmra.mrb[0].mxu0 %v372
    %v1528 = vpop.f32.mrb[0].mxu0
    %v1529 = vadd.f32 %v1486, %v1528
    %v1530 = vpop.f32.mrb[0].mxu0
    %v1531 = vadd.f32 %v1488, %v1530
    %v1532 = vpop.f32.mrb[0].mxu0
    %v1533 = vadd.f32 %v1490, %v1532
    %v1534 = vpop.f32.mrb[0].mxu0
    %v1535 = vadd.f32 %v1492, %v1534
    %1536 = vdwg.mxu0
    %1537 = vmatprep.subr.bf16.mxu0 %v1169
    %1538 = vmatpush1.bf16.msra.mxu0 %v1168
    %1539 = vmatprep.subr.bf16.mxu0 %v1172
    %1540 = vmatpush1.bf16.msra.mxu0 %v1171
    %1541 = vmatprep.subr.bf16.mxu0 %v1175
    %1542 = vmatpush1.bf16.msra.mxu0 %v1174
    %1543 = vmatprep.subr.bf16.mxu0 %v1178
    %1544 = vmatpush1.bf16.msra.mxu0 %v1177
    %1545 = vmatprep.subr.bf16.mxu0 %v1181
    %1546 = vmatpush1.bf16.msra.mxu0 %v1180
    %1547 = vmatprep.subr.bf16.mxu0 %v1184
    %1548 = vmatpush1.bf16.msra.mxu0 %v1183
    %1549 = vmatprep.subr.bf16.mxu0 %v1187
    %1550 = vmatpush1.bf16.msra.mxu0 %v1186
    %1551 = vmatprep.subr.bf16.mxu0 %v1190
    %1552 = vmatpush1.bf16.msra.mxu0 %v1189
    %1553 = vmatprep.subr.bf16.mxu0 %v1193
    %1554 = vmatpush1.bf16.msra.mxu0 %v1192
    %1555 = vmatprep.subr.bf16.mxu0 %v1196
    %1556 = vmatpush1.bf16.msra.mxu0 %v1195
    %1557 = vmatprep.subr.bf16.mxu0 %v1199
    %1558 = vmatpush1.bf16.msra.mxu0 %v1198
    %1559 = vmatprep.subr.bf16.mxu0 %v1202
    %1560 = vmatpush1.bf16.msra.mxu0 %v1201
    %1561 = vmatprep.subr.bf16.mxu0 %v1205
    %1562 = vmatpush1.bf16.msra.mxu0 %v1204
    %1563 = vmatprep.subr.bf16.mxu0 %v1208
    %1564 = vmatpush1.bf16.msra.mxu0 %v1207
    %1565 = vmatprep.subr.bf16.mxu0 %v1211
    %1566 = vmatpush1.bf16.msra.mxu0 %v1210
    %1567 = vmatprep.subr.bf16.mxu0 %v1214
    %1568 = vmatpush1.bf16.msra.mxu0 %v1213
    %1569 = vmatprep.mubr.bf16.mxu0 %v375
    %1570 = vmatmul.mubr.bf16.gmra.mrb[0].mxu0 %v374
    %v1571 = vpop.f32.mrb[0].mxu0
    %v1572 = vadd.f32 %v1529, %v1571
    %v1573 = vpop.f32.mrb[0].mxu0
    %v1574 = vadd.f32 %v1531, %v1573
    %v1575 = vpop.f32.mrb[0].mxu0
    %v1576 = vadd.f32 %v1533, %v1575
    %v1577 = vpop.f32.mrb[0].mxu0
    %v1578 = vadd.f32 %v1535, %v1577
    %1579 = vdwg.mxu0
    %1580 = vmatprep.subr.bf16.mxu0 0
    %1581 = vmatpush1.bf16.msra.mxu0 %v1026
    %1582 = vmatprep.subr.bf16.mxu0 0
    %1583 = vmatpush1.bf16.msra.mxu0 %v1029
    %1584 = vmatprep.subr.bf16.mxu0 0
    %1585 = vmatpush1.bf16.msra.mxu0 %v1032
    %1586 = vmatprep.subr.bf16.mxu0 0
    %1587 = vmatpush1.bf16.msra.mxu0 %v1035
    %1588 = vmatprep.subr.bf16.mxu0 0
    %1589 = vmatpush1.bf16.msra.mxu0 %v1038
    %1590 = vmatprep.subr.bf16.mxu0 0
    %1591 = vmatpush1.bf16.msra.mxu0 %v1041
    %1592 = vmatprep.subr.bf16.mxu0 0
    %1593 = vmatpush1.bf16.msra.mxu0 %v1044
    %1594 = vmatprep.subr.bf16.mxu0 0
    %1595 = vmatpush1.bf16.msra.mxu0 %v1047
    %1596 = vmatprep.subr.bf16.mxu0 0
    %1597 = vmatpush1.bf16.msra.mxu0 %v1050
    %1598 = vmatprep.subr.bf16.mxu0 0
    %1599 = vmatpush1.bf16.msra.mxu0 %v1053
    %1600 = vmatprep.subr.bf16.mxu0 0
    %1601 = vmatpush1.bf16.msra.mxu0 %v1056
    %1602 = vmatprep.subr.bf16.mxu0 0
    %1603 = vmatpush1.bf16.msra.mxu0 %v1059
    %1604 = vmatprep.subr.bf16.mxu0 0
    %1605 = vmatpush1.bf16.msra.mxu0 %v1062
    %1606 = vmatprep.subr.bf16.mxu0 0
    %1607 = vmatpush1.bf16.msra.mxu0 %v1065
    %1608 = vmatprep.subr.bf16.mxu0 0
    %1609 = vmatpush1.bf16.msra.mxu0 %v1068
    %1610 = vmatprep.subr.bf16.mxu0 0
    %1611 = vmatpush1.bf16.msra.mxu0 %v1071
    %1612 = vmatprep.mubr.bf16.mxu0 %v369
    %1613 = vmatmul.mubr.bf16.gmra.mrb[0].mxu0 %v368
    %v1614 = vpop.f32.mrb[0].mxu0
    %v1615 = vadd.f32 %v340, %v1614
    %v1616 = vpop.f32.mrb[0].mxu0
    %v1617 = vpop.f32.mrb[0].mxu0
    %v1618 = vadd.f32 %v340, %v1617
    %v1619 = vpop.f32.mrb[0].mxu0
    %1620 = vdwg.mxu0
    %1621 = vmatprep.subr.bf16.mxu0 0
    %1622 = vmatpush1.bf16.msra.mxu0 %v1074
    %1623 = vmatprep.subr.bf16.mxu0 0
    %1624 = vmatpush1.bf16.msra.mxu0 %v1077
    %1625 = vmatprep.subr.bf16.mxu0 0
    %1626 = vmatpush1.bf16.msra.mxu0 %v1080
    %1627 = vmatprep.subr.bf16.mxu0 0
    %1628 = vmatpush1.bf16.msra.mxu0 %v1083
    %1629 = vmatprep.subr.bf16.mxu0 0
    %1630 = vmatpush1.bf16.msra.mxu0 %v1086
    %1631 = vmatprep.subr.bf16.mxu0 0
    %1632 = vmatpush1.bf16.msra.mxu0 %v1089
    %1633 = vmatprep.subr.bf16.mxu0 0
    %1634 = vmatpush1.bf16.msra.mxu0 %v1092
    %1635 = vmatprep.subr.bf16.mxu0 0
    %1636 = vmatpush1.bf16.msra.mxu0 %v1095
    %1637 = vmatprep.subr.bf16.mxu0 0
    %1638 = vmatpush1.bf16.msra.mxu0 %v1098
    %1639 = vmatprep.subr.bf16.mxu0 0
    %1640 = vmatpush1.bf16.msra.mxu0 %v1101
    %1641 = vmatprep.subr.bf16.mxu0 0
    %1642 = vmatpush1.bf16.msra.mxu0 %v1104
    %1643 = vmatprep.subr.bf16.mxu0 0
    %1644 = vmatpush1.bf16.msra.mxu0 %v1107
    %1645 = vmatprep.subr.bf16.mxu0 0
    %1646 = vmatpush1.bf16.msra.mxu0 %v1110
    %1647 = vmatprep.subr.bf16.mxu0 0
    %1648 = vmatpush1.bf16.msra.mxu0 %v1113
    %1649 = vmatprep.subr.bf16.mxu0 0
    %1650 = vmatpush1.bf16.msra.mxu0 %v1116
    %1651 = vmatprep.subr.bf16.mxu0 0
    %1652 = vmatpush1.bf16.msra.mxu0 %v1119
    %1653 = vmatprep.mubr.bf16.mxu0 %v371
    %1654 = vmatmul.mubr.bf16.gmra.mrb[0].mxu0 %v370
    %v1655 = vpop.f32.mrb[0].mxu0
    %v1656 = vadd.f32 %v1615, %v1655
    %v1657 = vpop.f32.mrb[0].mxu0
    %v1658 = vpop.f32.mrb[0].mxu0
    %v1659 = vadd.f32 %v1618, %v1658
    %v1660 = vpop.f32.mrb[0].mxu0
    %1661 = vdwg.mxu0
    %1662 = vmatprep.subr.bf16.mxu0 0
    %1663 = vmatpush1.bf16.msra.mxu0 %v1122
    %1664 = vmatprep.subr.bf16.mxu0 0
    %1665 = vmatpush1.bf16.msra.mxu0 %v1125
    %1666 = vmatprep.subr.bf16.mxu0 0
    %1667 = vmatpush1.bf16.msra.mxu0 %v1128
    %1668 = vmatprep.subr.bf16.mxu0 0
    %1669 = vmatpush1.bf16.msra.mxu0 %v1131
    %1670 = vmatprep.subr.bf16.mxu0 0
    %1671 = vmatpush1.bf16.msra.mxu0 %v1134
    %1672 = vmatprep.subr.bf16.mxu0 0
    %1673 = vmatpush1.bf16.msra.mxu0 %v1137
    %1674 = vmatprep.subr.bf16.mxu0 0
    %1675 = vmatpush1.bf16.msra.mxu0 %v1140
    %1676 = vmatprep.subr.bf16.mxu0 0
    %1677 = vmatpush1.bf16.msra.mxu0 %v1143
    %1678 = vmatprep.subr.bf16.mxu0 0
    %1679 = vmatpush1.bf16.msra.mxu0 %v1146
    %1680 = vmatprep.subr.bf16.mxu0 0
    %1681 = vmatpush1.bf16.msra.mxu0 %v1149
    %1682 = vmatprep.subr.bf16.mxu0 0
    %1683 = vmatpush1.bf16.msra.mxu0 %v1152
    %1684 = vmatprep.subr.bf16.mxu0 0
    %1685 = vmatpush1.bf16.msra.mxu0 %v1155
    %1686 = vmatprep.subr.bf16.mxu0 0
    %1687 = vmatpush1.bf16.msra.mxu0 %v1158
    %1688 = vmatprep.subr.bf16.mxu0 0
    %1689 = vmatpush1.bf16.msra.mxu0 %v1161
    %1690 = vmatprep.subr.bf16.mxu0 0
    %1691 = vmatpush1.bf16.msra.mxu0 %v1164
    %1692 = vmatprep.subr.bf16.mxu0 0
    %1693 = vmatpush1.bf16.msra.mxu0 %v1167
    %1694 = vmatprep.mubr.bf16.mxu0 %v373
    %1695 = vmatmul.mubr.bf16.gmra.mrb[0].mxu0 %v372
    %v1696 = vpop.f32.mrb[0].mxu0
    %v1697 = vadd.f32 %v1656, %v1696
    %v1698 = vpop.f32.mrb[0].mxu0
    %v1699 = vpop.f32.mrb[0].mxu0
    %v1700 = vadd.f32 %v1659, %v1699
    %v1701 = vpop.f32.mrb[0].mxu0
    %1702 = vdwg.mxu0
    %1703 = vmatprep.subr.bf16.mxu0 0
    %1704 = vmatpush1.bf16.msra.mxu0 %v1170
    %1705 = vmatprep.subr.bf16.mxu0 0
    %1706 = vmatpush1.bf16.msra.mxu0 %v1173
    %1707 = vmatprep.subr.bf16.mxu0 0
    %1708 = vmatpush1.bf16.msra.mxu0 %v1176
    %1709 = vmatprep.subr.bf16.mxu0 0
    %1710 = vmatpush1.bf16.msra.mxu0 %v1179
    %1711 = vmatprep.subr.bf16.mxu0 0
    %1712 = vmatpush1.bf16.msra.mxu0 %v1182
    %1713 = vmatprep.subr.bf16.mxu0 0
    %1714 = vmatpush1.bf16.msra.mxu0 %v1185
    %1715 = vmatprep.subr.bf16.mxu0 0
    %1716 = vmatpush1.bf16.msra.mxu0 %v1188
    %1717 = vmatprep.subr.bf16.mxu0 0
    %1718 = vmatpush1.bf16.msra.mxu0 %v1191
    %1719 = vmatprep.subr.bf16.mxu0 0
    %1720 = vmatpush1.bf16.msra.mxu0 %v1194
    %1721 = vmatprep.subr.bf16.mxu0 0
    %1722 = vmatpush1.bf16.msra.mxu0 %v1197
    %1723 = vmatprep.subr.bf16.mxu0 0
    %1724 = vmatpush1.bf16.msra.mxu0 %v1200
    %1725 = vmatprep.subr.bf16.mxu0 0
    %1726 = vmatpush1.bf16.msra.mxu0 %v1203
    %1727 = vmatprep.subr.bf16.mxu0 0
    %1728 = vmatpush1.bf16.msra.mxu0 %v1206
    %1729 = vmatprep.subr.bf16.mxu0 0
    %1730 = vmatpush1.bf16.msra.mxu0 %v1209
    %1731 = vmatprep.subr.bf16.mxu0 0
    %1732 = vmatpush1.bf16.msra.mxu0 %v1212
    %1733 = vmatprep.subr.bf16.mxu0 0
    %1734 = vmatpush1.bf16.msra.mxu0 %v1215
    %1735 = vmatprep.mubr.bf16.mxu0 %v375
    %1736 = vmatmul.mubr.bf16.gmra.mrb[0].mxu0 %v374
    %v1737 = vpop.f32.mrb[0].mxu0
    %v1738 = vadd.f32 %v1697, %v1737
    %v1739 = vpop.f32.mrb[0].mxu0
    %v1740 = vpop.f32.mrb[0].mxu0
    %v1741 = vadd.f32 %v1700, %v1740
    %v1742 = vpop.f32.mrb[0].mxu0
    %1743 = vdwg.mxu0
    %v1744 = vmax.f32 %v1572, 0.0
    %v1745 = vmax.f32 %v1574, 0.0
    %v1746 = vmax.f32 %v1738, 0.0
    %v1747 = vmax.f32 %v1576, 0.0
    %v1748 = vmax.f32 %v1578, 0.0
    %v1749 = vmax.f32 %v1741, 0.0
    %v1750 = vpack.c.bf16 %v1747, %v1744
    %v1751 = vpack.c.bf16 %v1748, %v1745
    %v1752 = vpack.c.bf16 %v1749, %v1746
    %v1753 = vld [vmem:[#allocation7] sm:$0xf]
    %v1754 = vld [vmem:[#allocation7 + $0x4] sm:$0xf]
    %v1755 = vld [vmem:[#allocation7 + $0x8] sm:$0xf]
    %v1756 = vld [vmem:[#allocation7 + $0xc] sm:$0xf]
    %v1757 = vld [vmem:[#allocation7 + $0x10] sm:$0xf]
    %v1758 = vld [vmem:[#allocation7 + $0x14] sm:$0xf]
    %v1759 = vld [vmem:[#allocation7 + $0x18] sm:$0xf]
    %v1760 = vld [vmem:[#allocation7 + $0x1c] sm:$0xf]
    %v1761 = vld [vmem:[#allocation7 + $0x20] sm:$0xf]
    %v1762 = vld [vmem:[#allocation7 + $0x24] sm:$0xf]
    %v1763 = vld [vmem:[#allocation7 + $0x28] sm:$0xf]
    %v1764 = vld [vmem:[#allocation7 + $0x2c] sm:$0xf]
    %v1765 = vld [vmem:[#allocation7 + $0x30] sm:$0xf]
    %v1766 = vld [vmem:[#allocation7 + $0x34] sm:$0xf]
    %v1767 = vld [vmem:[#allocation7 + $0x38] sm:$0xf]
    %v1768 = vld [vmem:[#allocation7 + $0x3c] sm:$0xf]
    %v1769 = vld [vmem:[#allocation7 + $0x40] sm:$0xf]
    %v1770 = vld [vmem:[#allocation7 + $0x44] sm:$0xf]
    %v1771 = vld [vmem:[#allocation7 + $0x48] sm:$0xf]
    %v1772 = vld [vmem:[#allocation7 + $0x4c] sm:$0xf]
    %v1773 = vld [vmem:[#allocation7 + $0x50] sm:$0xf]
    %v1774 = vld [vmem:[#allocation7 + $0x54] sm:$0xf]
    %v1775 = vld [vmem:[#allocation7 + $0x58] sm:$0xf]
    %v1776 = vld [vmem:[#allocation7 + $0x5c] sm:$0xf]
    %v1777 = vld [vmem:[#allocation7 + $0x60] sm:$0xf]
    %v1778 = vld [vmem:[#allocation7 + $0x64] sm:$0xf]
    %v1779 = vld [vmem:[#allocation7 + $0x68] sm:$0xf]
    %v1780 = vld [vmem:[#allocation7 + $0x6c] sm:$0xf]
    %v1781 = vld [vmem:[#allocation7 + $0x70] sm:$0xf]
    %v1782 = vld [vmem:[#allocation7 + $0x74] sm:$0xf]
    %v1783 = vld [vmem:[#allocation7 + $0x78] sm:$0xf]
    %v1784 = vld [vmem:[#allocation7 + $0x7c] sm:$0xf]
    %v1785 = vld [vmem:[#allocation7 + $0x80] sm:$0xf]
    %v1786 = vld [vmem:[#allocation7 + $0x84] sm:$0xf]
    %v1787 = vld [vmem:[#allocation7 + $0x88] sm:$0xf]
    %v1788 = vld [vmem:[#allocation7 + $0x8c] sm:$0xf]
    %v1789 = vld [vmem:[#allocation7 + $0x90] sm:$0xf]
    %v1790 = vld [vmem:[#allocation7 + $0x94] sm:$0xf]
    %v1791 = vld [vmem:[#allocation7 + $0x98] sm:$0xf]
    %v1792 = vld [vmem:[#allocation7 + $0x9c] sm:$0xf]
    %v1793 = vld [vmem:[#allocation7 + $0xa0] sm:$0xf]
    %v1794 = vld [vmem:[#allocation7 + $0xa4] sm:$0xf]
    %v1795 = vld [vmem:[#allocation7 + $0xa8] sm:$0xf]
    %v1796 = vld [vmem:[#allocation7 + $0xac] sm:$0xf]
    %v1797 = vld [vmem:[#allocation7 + $0xb0] sm:$0xf]
    %v1798 = vld [vmem:[#allocation7 + $0xb4] sm:$0xf]
    %v1799 = vld [vmem:[#allocation7 + $0xb8] sm:$0xf]
    %v1800 = vld [vmem:[#allocation7 + $0xbc] sm:$0xf]
    %v1801 = vld [vmem:[%s4] sm:$0x1]
    %v1803 = vlaneseq
    %v1804 = vshrl.u32 %v1803, 7
    %v1805 = vsub.s32 0, %v1804
    %v1806 = vrot.slane %v1801, %v1805
    %v1856 = vunpack.c.l.b16 %v1753
    %v1857 = vunpack.c.l.b16 %v1754
    %v1858 = vunpack.c.l.b16 %v1755
    %v1859 = vunpack.c.l.b16 %v1756
    %v1860 = vunpack.c.l.b16 %v1757
    %v1861 = vunpack.c.l.b16 %v1758
    %v1862 = vunpack.c.l.b16 %v1759
    %v1863 = vunpack.c.l.b16 %v1760
    %v1864 = vunpack.c.l.b16 %v1761
    %v1865 = vunpack.c.l.b16 %v1762
    %v1866 = vunpack.c.l.b16 %v1763
    %v1867 = vunpack.c.l.b16 %v1764
    %v1868 = vunpack.c.l.b16 %v1765
    %v1869 = vunpack.c.l.b16 %v1766
    %v1870 = vunpack.c.l.b16 %v1767
    %v1871 = vunpack.c.l.b16 %v1768
    %v1872 = vunpack.c.l.b16 %v1769
    %v1873 = vunpack.c.l.b16 %v1770
    %v1874 = vunpack.c.l.b16 %v1771
    %v1875 = vunpack.c.l.b16 %v1772
    %v1876 = vunpack.c.l.b16 %v1773
    %v1877 = vunpack.c.l.b16 %v1774
    %v1878 = vunpack.c.l.b16 %v1775
    %v1879 = vunpack.c.l.b16 %v1776
    %v1880 = vunpack.c.l.b16 %v1777
    %v1881 = vunpack.c.l.b16 %v1778
    %v1882 = vunpack.c.l.b16 %v1779
    %v1883 = vunpack.c.l.b16 %v1780
    %v1884 = vunpack.c.l.b16 %v1781
    %v1885 = vunpack.c.l.b16 %v1782
    %v1886 = vunpack.c.l.b16 %v1783
    %v1887 = vunpack.c.l.b16 %v1784
    %v1888 = vunpack.c.l.b16 %v1785
    %v1889 = vunpack.c.l.b16 %v1786
    %v1890 = vunpack.c.l.b16 %v1787
    %v1891 = vunpack.c.l.b16 %v1788
    %v1892 = vunpack.c.l.b16 %v1789
    %v1893 = vunpack.c.l.b16 %v1790
    %v1894 = vunpack.c.l.b16 %v1791
    %v1895 = vunpack.c.l.b16 %v1792
    %v1896 = vunpack.c.l.b16 %v1793
    %v1897 = vunpack.c.l.b16 %v1794
    %v1898 = vunpack.c.l.b16 %v1795
    %v1899 = vunpack.c.l.b16 %v1796
    %v1900 = vunpack.c.l.b16 %v1797
    %v1901 = vunpack.c.l.b16 %v1798
    %v1902 = vunpack.c.l.b16 %v1799
    %v1903 = vunpack.c.l.b16 %v1800
    %v1904 = vpack.c.b16 %v1857, %v1856
    %v1905 = vpack.c.b16 %v1859, %v1858
    %v1906 = vpack.c.b16 %v1861, %v1860
    %v1907 = vpack.c.b16 %v1863, %v1862
    %v1908 = vpack.c.b16 %v1865, %v1864
    %v1909 = vpack.c.b16 %v1867, %v1866
    %v1910 = vpack.c.b16 %v1869, %v1868
    %v1911 = vpack.c.b16 %v1871, %v1870
    %v1912 = vpack.c.b16 %v1873, %v1872
    %v1913 = vpack.c.b16 %v1875, %v1874
    %v1914 = vpack.c.b16 %v1877, %v1876
    %v1915 = vpack.c.b16 %v1879, %v1878
    %v1916 = vpack.c.b16 %v1881, %v1880
    %v1917 = vpack.c.b16 %v1883, %v1882
    %v1918 = vpack.c.b16 %v1885, %v1884
    %v1919 = vpack.c.b16 %v1887, %v1886
    %v1920 = vpack.c.b16 %v1889, %v1888
    %v1921 = vpack.c.b16 %v1891, %v1890
    %v1922 = vpack.c.b16 %v1893, %v1892
    %v1923 = vpack.c.b16 %v1895, %v1894
    %v1924 = vpack.c.b16 %v1897, %v1896
    %v1925 = vpack.c.b16 %v1899, %v1898
    %v1926 = vpack.c.b16 %v1901, %v1900
    %v1927 = vpack.c.b16 %v1903, %v1902
    %1952 = vmatprep.subr.bf16.mxu0 0
    %1953 = vmatpush1.bf16.msra.mxu0 %v1904
    %1954 = vmatprep.subr.bf16.mxu0 0
    %1955 = vmatpush1.bf16.msra.mxu0 %v1905
    %1956 = vmatprep.subr.bf16.mxu0 0
    %1957 = vmatpush1.bf16.msra.mxu0 %v1906
    %1958 = vmatprep.subr.bf16.mxu0 0
    %1959 = vmatpush1.bf16.msra.mxu0 %v1907
    %1960 = vmatprep.subr.bf16.mxu0 0
    %1961 = vmatpush1.bf16.msra.mxu0 %v1908
    %1962 = vmatprep.subr.bf16.mxu0 0
    %1963 = vmatpush1.bf16.msra.mxu0 %v1909
    %1964 = vmatprep.subr.bf16.mxu0 0
    %1965 = vmatpush1.bf16.msra.mxu0 %v1910
    %1966 = vmatprep.subr.bf16.mxu0 0
    %1967 = vmatpush1.bf16.msra.mxu0 %v1911
    %1968 = vmatprep.subr.bf16.mxu0 0
    %1969 = vmatpush1.bf16.msra.mxu0 %v1912
    %1970 = vmatprep.subr.bf16.mxu0 0
    %1971 = vmatpush1.bf16.msra.mxu0 %v1913
    %1972 = vmatprep.subr.bf16.mxu0 0
    %1973 = vmatpush1.bf16.msra.mxu0 %v1914
    %1974 = vmatprep.subr.bf16.mxu0 0
    %1975 = vmatpush1.bf16.msra.mxu0 %v1915
    %1976 = vmatprep.subr.bf16.mxu0 0
    %1977 = vmatpush1.bf16.msra.mxu0 %v1916
    %1978 = vmatprep.subr.bf16.mxu0 0
    %1979 = vmatpush1.bf16.msra.mxu0 %v1917
    %1980 = vmatprep.subr.bf16.mxu0 0
    %1981 = vmatpush1.bf16.msra.mxu0 %v1918
    %1982 = vmatprep.subr.bf16.mxu0 0
    %1983 = vmatpush1.bf16.msra.mxu0 %v1919
    %1984 = vmatprep.mubr.bf16.mxu0 %v1751
    %1985 = vmatmul.mubr.bf16.gmra.mrb[0].mxu0 %v1750
    %v1986 = vpop.f32.mrb[0].mxu0
    %v1987 = vadd.f32 %v1806, %v1986
    %v1988 = vpop.f32.mrb[0].mxu0
    %v1989 = vpop.f32.mrb[0].mxu0
    %v1990 = vadd.f32 %v1806, %v1989
    %v1991 = vpop.f32.mrb[0].mxu0
    %1992 = vdwg.mxu0
    %1993 = vmatprep.subr.bf16.mxu0 0
    %1994 = vmatpush1.bf16.msra.mxu0 %v1920
    %1995 = vmatprep.subr.bf16.mxu0 0
    %1996 = vmatpush1.bf16.msra.mxu0 %v1921
    %1997 = vmatprep.subr.bf16.mxu0 0
    %1998 = vmatpush1.bf16.msra.mxu0 %v1922
    %1999 = vmatprep.subr.bf16.mxu0 0
    %2000 = vmatpush1.bf16.msra.mxu0 %v1923
    %2001 = vmatprep.subr.bf16.mxu0 0
    %2002 = vmatpush1.bf16.msra.mxu0 %v1924
    %2003 = vmatprep.subr.bf16.mxu0 0
    %2004 = vmatpush1.bf16.msra.mxu0 %v1925
    %2005 = vmatprep.subr.bf16.mxu0 0
    %2006 = vmatpush1.bf16.msra.mxu0 %v1926
    %2007 = vmatprep.subr.bf16.mxu0 0
    %2008 = vmatpush1.bf16.msra.mxu0 %v1927
    %2009 = vmatprep.subr.bf16.mxu0 0
    %2010 = vmatpush1.bf16.msra.mxu0 0
    %2011 = vmatprep.subr.bf16.mxu0 0
    %2012 = vmatpush1.bf16.msra.mxu0 0
    %2013 = vmatprep.subr.bf16.mxu0 0
    %2014 = vmatpush1.bf16.msra.mxu0 0
    %2015 = vmatprep.subr.bf16.mxu0 0
    %2016 = vmatpush1.bf16.msra.mxu0 0
    %2017 = vmatprep.subr.bf16.mxu0 0
    %2018 = vmatpush1.bf16.msra.mxu0 0
    %2019 = vmatprep.subr.bf16.mxu0 0
    %2020 = vmatpush1.bf16.msra.mxu0 0
    %2021 = vmatprep.subr.bf16.mxu0 0
    %2022 = vmatpush1.bf16.msra.mxu0 0
    %2023 = vmatprep.subr.bf16.mxu0 0
    %2024 = vmatpush1.bf16.msra.mxu0 0
    %2025 = vmatprep.mubr.bf16.mxu0 0
    %2026 = vmatmul.mubr.bf16.gmra.mrb[0].mxu0 %v1752
    %v2027 = vpop.f32.mrb[0].mxu0
    %v2028 = vadd.f32 %v1987, %v2027
    %v2029 = vpop.f32.mrb[0].mxu0
    %v2030 = vpop.f32.mrb[0].mxu0
    %v2031 = vadd.f32 %v1990, %v2030
    %v2032 = vpop.f32.mrb[0].mxu0
    %2033 = vdwg.mxu0
    %2034 = vst [vmem:[#allocation8] sm:$0xff] %v2028
    %2035 = vst [vmem:[#allocation8 + $0x8] sm:$0xff] %v2031
    // Predicated region
    $region34: #{tpu_custom_call.1} parent=1 // pred_check
      _
    $region35: #{tpu_custom_call.1} parent=1 // pred_check_branch
      %2037 = sbr.rel (0) target = $region37
    $region36: #{tpu_custom_call.1} parent=1 // pred_region
      %s2039 = ssub.s32 256, 256
      %2040 = vsyncadd [#allocation4], %s2039
      %s2041 = sshll.u32 [#allocation8], 4
      %s2042 = int_to_ptr.vmem [resolvable:$true] %s2041
      %2047 = dma.vmem_to_hbm [thread:$0]  %s2042, 256, %s5, [#allocation4], 128, 128, 8
    $region37: #{tpu_custom_call.1} parent=1 // pred_fallthru
      _
    // Predicated region
    $region38: #{tpu_custom_call.1} parent=1 // pred_check
      _
    $region39: #{tpu_custom_call.1} parent=1 // pred_check_branch
      %2049 = sbr.rel (0) target = $region41
    $region40: #{tpu_custom_call.1} parent=1 // pred_region
      %2050 = dma.done [#allocation4], 256
    $region41: #{tpu_custom_call.1} parent=1 // pred_fallthru
      _
    %2051 = vsyncpa [#allocation3], 1
    %2052 = vsyncpa [#allocation6], 1
    %2053 = vsyncpa [#allocation4], 1

</llo_original>
